<compile_context>
chip_gen: v6e
topology: v6e:2x2x1
jax: 0.10.0
libtpu: 0.0.40
codegen_flags: <defaults>
</compile_context>

<pallas_src>
import numpy as np
import jax
import jax.numpy as jnp
from jax import lax
from jax.experimental import pallas as pl
from jax.experimental.pallas import tpu as pltpu

# Conservative scoped-VMEM limit: fine on v5e/v6e (128 MiB) and v7x (64 MiB);
# tile choices below keep the actual footprint well under this.
_VMEM_LIMIT = 48 * 1024 * 1024


def _round_up(x, m):
    return (x + m - 1) // m * m


def _cdiv(a, b):
    return (a + b - 1) // b


# ---------------------------------------------------------------------------
# Generic tiled matmul + bias:  out = x @ w + b   (bf16-friendly, f32 accum)
# ---------------------------------------------------------------------------
def _matmul_bias_kernel_nok(x_ref, w_ref, b_ref, o_ref):
    # Single K tile: no reduction grid axis, no accumulator scratch.
    o_ref[...] = (jnp.dot(x_ref[...], w_ref[...],
                          preferred_element_type=jnp.float32)
                  + b_ref[...]).astype(o_ref.dtype)


def _matmul_bias_kernel_k(x_ref, w_ref, b_ref, o_ref, acc_ref):
    k = pl.program_id(2)

    @pl.when(k == 0)
    def _():
        acc_ref[...] = jnp.zeros_like(acc_ref)

    acc_ref[...] += jnp.dot(x_ref[...], w_ref[...],
                            preferred_element_type=jnp.float32)

    @pl.when(k == pl.num_programs(2) - 1)
    def _():
        o_ref[...] = (acc_ref[...] + b_ref[...]).astype(o_ref.dtype)


def pallas_matmul_bias(x, w, b, *, tm=512, tn=512, tk=512, out_dtype=jnp.float32):
    """x: (M, K), w: (K, N), b: (1, N) -> (M, N). Pads to tile multiples."""
    M, K = x.shape
    _, N = w.shape

    tm = min(tm, _round_up(M, 16))
    if M % tm:                       # avoid large M padding when a divisor fits
        for c in (256, 128, 64, 32, 16):
            if c < tm and M % c == 0:
                tm = c
                break
    tn = min(tn, _round_up(N, 128))
    tk = min(tk, _round_up(K, 128))

    Mp, Np, Kp = _round_up(M, tm), _round_up(N, tn), _round_up(K, tk)

    xp = jnp.pad(x, ((0, Mp - M), (0, Kp - K))) if (Mp != M or Kp != K) else x
    wp = jnp.pad(w, ((0, Kp - K), (0, Np - N))) if (Kp != K or Np != N) else w
    bp = jnp.pad(b, ((0, 0), (0, Np - N))) if Np != N else b

    if Kp == tk:
        out = pl.pallas_call(
            _matmul_bias_kernel_nok,
            out_shape=jax.ShapeDtypeStruct((Mp, Np), out_dtype),
            grid_spec=pltpu.PrefetchScalarGridSpec(
                num_scalar_prefetch=0,
                grid=(Mp // tm, Np // tn),
                in_specs=[
                    pl.BlockSpec((tm, Kp), lambda i, j: (i, 0)),
                    pl.BlockSpec((Kp, tn), lambda i, j: (0, j)),
                    pl.BlockSpec((1, tn), lambda i, j: (0, j)),
                ],
                out_specs=pl.BlockSpec((tm, tn), lambda i, j: (i, j)),
            ),
            compiler_params=pltpu.CompilerParams(
                dimension_semantics=("parallel", "parallel"),
                vmem_limit_bytes=_VMEM_LIMIT),
        )(xp, wp, bp)
    else:
        out = pl.pallas_call(
            _matmul_bias_kernel_k,
            out_shape=jax.ShapeDtypeStruct((Mp, Np), out_dtype),
            grid_spec=pltpu.PrefetchScalarGridSpec(
                num_scalar_prefetch=0,
                grid=(Mp // tm, Np // tn, Kp // tk),
                in_specs=[
                    pl.BlockSpec((tm, tk), lambda i, j, k: (i, k)),
                    pl.BlockSpec((tk, tn), lambda i, j, k: (k, j)),
                    pl.BlockSpec((1, tn), lambda i, j, k: (0, j)),
                ],
                out_specs=pl.BlockSpec((tm, tn), lambda i, j, k: (i, j)),
                scratch_shapes=[pltpu.VMEM((tm, tn), jnp.float32)],
            ),
            compiler_params=pltpu.CompilerParams(
                dimension_semantics=("parallel", "parallel", "arbitrary"),
                vmem_limit_bytes=_VMEM_LIMIT),
        )(xp, wp, bp)
    return out[:M, :N]


# ---------------------------------------------------------------------------
# Fused GRU kernel: input projection for the whole time-slab + Tblk recurrence
# steps per grid iteration (bf16 MXU operands, f32 gate math and h carry).
# ---------------------------------------------------------------------------
def gru_fused_kernel(x_ref, wih_ref, whh_ref, gibias_ref, bhhn_ref,
                     h_all_ref, h_ref, gi_ref):
    Tblk, btile, Ep = x_ref.shape
    Hp = h_ref.shape[-1]

    @pl.when(pl.program_id(1) == 0)      # first time block of this batch tile
    def _():
        h_ref[...] = jnp.zeros_like(h_ref)

    # Fused input projection for the whole (Tblk*btile, Ep) slab: one MXU call.
    x2d = x_ref[...].reshape(Tblk * btile, Ep)                       # bf16
    gi = jnp.dot(x2d, wih_ref[...], preferred_element_type=jnp.float32)
    gi_ref[...] = (gi + gibias_ref[...]).reshape(Tblk, btile, 3 * Hp)

    whh = whh_ref[...]                                               # bf16 (Hp, 3Hp)
    bhh_n = jnp.broadcast_to(bhhn_ref[...], (btile, Hp))             # hoisted broadcast

    def step(i, h):
        g = gi_ref[i]                    # (btile, 3Hp) f32: x_t@W_ih^T + b_ih + b_hh[r,z]
        gh = jnp.dot(h.astype(jnp.bfloat16), whh,
                     preferred_element_type=jnp.float32)
        r = jax.nn.sigmoid(g[:, 0:Hp] + gh[:, 0:Hp])
        z = jax.nn.sigmoid(g[:, Hp:2 * Hp] + gh[:, Hp:2 * Hp])
        n = jnp.tanh(g[:, 2 * Hp:] + r * (gh[:, 2 * Hp:] + bhh_n))
        h_new = (1.0 - z) * n + z * h
        h_all_ref[i] = h_new.astype(h_all_ref.dtype)                 # bf16 store
        return h_new

    h_ref[...] = lax.fori_loop(0, Tblk, step, h_ref[...], unroll=True)


# ---------------------------------------------------------------------------
# Decoder.forward
# ---------------------------------------------------------------------------
def decoder_forward(img, cap, caplen, params, *, tblk=16):
    """Mirrors Decoder.forward(img, cap, caplen) -> (predictions, decoder_length)."""
    emb = params["emb"]                  # (V, E)
    W_ih, W_hh = params["W_ih"], params["W_hh"]      # (3H, E), (3H, H)
    b_ih, b_hh = params["b_ih"], params["b_hh"]      # (3H,), (3H,)
    W_out, b_out = params["W_out"], params["b_out"]  # (V, H), (V,)

    B, E = img.shape
    H = W_hh.shape[1]
    V = W_out.shape[0]
    f32, bf16 = jnp.float32, jnp.bfloat16

    # caplen is host data (list / numpy), as in the torch module's .tolist();
    # no device->host sync happens here and T is static per compiled variant.
    decoder_length = [int(l) for l in np.asarray(caplen)]
    T = max(decoder_length)

    Ep = _round_up(E, 128)
    Hp = _round_up(H, 128)

    # Batch tile: keep >=2 parallel tiles for v7x's two TCs when possible,
    # allow 256-row recurrence steps for large batches (fills v6e/v7x MXU).
    if B >= 512 and B % 256 == 0:
        btile = 256
    elif B >= 128:
        btile = 128
    else:
        btile = _round_up(B, 16)         # multiple of 16 for bf16 sublane packing
    Bp = _round_up(B, btile)

    # Time block: amortize per-grid-step overhead, keep gi scratch <= ~8 MiB,
    # and balance blocks so time padding is minimal.
    max_tblk = max(1, (8 * 1024 * 1024) // (btile * 3 * Hp * 4))
    Tblk = max(1, min(tblk, T, max_tblk))
    nblk = _cdiv(T, Tblk)
    Tblk = _cdiv(T, nblk)
    Tp = Tblk * nblk

    # --- glue: embedding + teacher-forcing concat (time-major, bf16) ---
    word_emb = jnp.take(emb, cap, axis=0)                                # (B, Tcap, E)
    x_cat = jnp.concatenate([img[:, None, :], word_emb[:, :-1, :]],
                            axis=1)[:, :T, :]                            # (B, T, E)
    x_tm = jnp.transpose(x_cat, (1, 0, 2)).astype(bf16)                  # (T, B, E)
    x_p = jnp.pad(x_tm, ((0, Tp - T), (0, Bp - B), (0, Ep - E)))         # (Tp, Bp, Ep)

    # --- per-gate zero padding of GRU params (gate order r, z, n) ---
    def pad_gate_cols(w2d):  # (rows, 3H) -> (rows, 3Hp), each gate lane-aligned
        r, z, n = w2d[:, :H], w2d[:, H:2 * H], w2d[:, 2 * H:]
        pad = ((0, 0), (0, Hp - H))
        return jnp.concatenate(
            [jnp.pad(r, pad), jnp.pad(z, pad), jnp.pad(n, pad)], axis=1)

    wih_T = jnp.pad(pad_gate_cols(W_ih.T.astype(f32)), ((0, Ep - E), (0, 0)))  # (Ep, 3Hp)
    whh_T = jnp.pad(pad_gate_cols(W_hh.T.astype(f32)), ((0, Hp - H), (0, 0)))  # (Hp, 3Hp)
    bih_p = pad_gate_cols(b_ih[None, :].astype(f32))                           # (1, 3Hp)
    bhh_p = pad_gate_cols(b_hh[None, :].astype(f32))                           # (1, 3Hp)
    # Fold the r/z part of b_hh into the precomputed bias; the n-gate b_hh is
    # kept separate because it is scaled by r inside the recurrence.
    gi_bias = bih_p.at[:, :2 * Hp].add(bhh_p[:, :2 * Hp])                      # (1, 3Hp)
    bhh_n = bhh_p[:, 2 * Hp:]                                                  # (1, Hp)

    # --- fused input projection + serial GRU recurrence ---
    h_all = pl.pallas_call(
        gru_fused_kernel,
        out_shape=jax.ShapeDtypeStruct((Tp, Bp, Hp), bf16),
        grid_spec=pltpu.PrefetchScalarGridSpec(
            num_scalar_prefetch=0,
            grid=(Bp // btile, Tp // Tblk),
            in_specs=[
                pl.BlockSpec((Tblk, btile, Ep), lambda b, t: (t, b, 0)),
                pl.BlockSpec((Ep, 3 * Hp), lambda b, t: (0, 0)),
                pl.BlockSpec((Hp, 3 * Hp), lambda b, t: (0, 0)),
                pl.BlockSpec((1, 3 * Hp), lambda b, t: (0, 0)),
                pl.BlockSpec((1, Hp), lambda b, t: (0, 0)),
            ],
            out_specs=pl.BlockSpec((Tblk, btile, Hp), lambda b, t: (t, b, 0)),
            scratch_shapes=[pltpu.VMEM((btile, Hp), f32),             # hidden state
                            pltpu.VMEM((Tblk, btile, 3 * Hp), f32)],  # gi slab
        ),
        compiler_params=pltpu.CompilerParams(
            dimension_semantics=("parallel", "arbitrary"),
            vmem_limit_bytes=_VMEM_LIMIT),
    )(x_p, wih_T.astype(bf16), whh_T.astype(bf16), gi_bias, bhh_n)

    # --- output Linear, one big tiled MXU matmul (bf16 in, f32 accumulate) ---
    wout_T = jnp.pad(W_out.T.astype(f32), ((0, Hp - H), (0, 0))).astype(bf16)  # (Hp, V)
    bout = b_out[None, :].astype(f32)                                          # (1, V)
    pred2d = pallas_matmul_bias(h_all.reshape(Tp * Bp, Hp), wout_T, bout,
                                out_dtype=bf16)                                # (Tp*Bp, V)
    pred = pred2d.reshape(Tp, Bp, V)[:T, :B, :]                                # (T, B, V)
    # Final layout change to (B, T, V); bf16 source + fused f32 upcast halves
    # the read side of this pass.
    predictions = jnp.transpose(pred, (1, 0, 2)).astype(f32)                   # (B, T, V)
    # TODO(synk): Decoder.inference (greedy argmax decode loop) is not implemented here.
    return predictions, decoder_length


# ---------------------------------------------------------------------------
# Pure-JAX reference (torch.nn.GRUCell + Linear semantics), mirroring the
# kernel's bf16-operand / f32-accumulate matmul precision so the comparison
# is tight while remaining structurally independent (per-step loop, no pad).
# ---------------------------------------------------------------------------
def reference_forward(img, cap, caplen, params):
    emb, W_ih, W_hh = params["emb"], params["W_ih"], params["W_hh"]
    b_ih, b_hh = params["b_ih"], params["b_hh"]
    W_out, b_out = params["W_out"], params["b_out"]
    B, E = img.shape
    H = W_hh.shape[1]
    T = max(int(l) for l in np.asarray(caplen))
    bf16, f32 = jnp.bfloat16, jnp.float32

    word_emb = jnp.take(emb, cap, axis=0)
    x_cat = jnp.concatenate([img[:, None, :], word_emb[:, :-1, :]],
                            axis=1)[:, :T, :].astype(bf16)
    wih_T = W_ih.T.astype(bf16)
    whh_T = W_hh.T.astype(bf16)
    wout_T = W_out.T.astype(bf16)

    h = jnp.zeros((B, H), f32)
    preds = []
    for i in range(T):
        x = x_cat[:, i, :]
        gi = jnp.dot(x, wih_T, preferred_element_type=f32) + b_ih
        gh = jnp.dot(h.astype(bf16), whh_T, preferred_element_type=f32) + b_hh
        r = jax.nn.sigmoid(gi[:, :H] + gh[:, :H])
        z = jax.nn.sigmoid(gi[:, H:2 * H] + gh[:, H:2 * H])
        n = jnp.tanh(gi[:, 2 * H:] + r * gh[:, 2 * H:])
        h = (1.0 - z) * n + z * h
        p = jnp.dot(h.astype(bf16), wout_T, preferred_element_type=f32) + b_out
        preds.append(p.astype(bf16).astype(f32))
    return jnp.stack(preds, axis=1)


def init_params(key, word_emb_size, hidden_size, vocab_size):
    E, H, V = word_emb_size, hidden_size, vocab_size
    ks = jax.random.split(key, 7)
    s = 0.1
    return {
        "emb":   s * jax.random.normal(ks[0], (V, E), jnp.float32),
        "W_ih":  s * jax.random.normal(ks[1], (3 * H, E), jnp.float32),
        "W_hh":  s * jax.random.normal(ks[2], (3 * H, H), jnp.float32),
        "b_ih":  s * jax.random.normal(ks[3], (3 * H,), jnp.float32),
        "b_hh":  s * jax.random.normal(ks[4], (3 * H,), jnp.float32),
        "W_out": s * jax.random.normal(ks[5], (V, H), jnp.float32),
        "b_out": s * jax.random.normal(ks[6], (V,), jnp.float32),
    }


if __name__ == "__main__":
    word_emb_size, hidden_size, vocab_size = 16, 32, 50
    batch_size, seq_len = 4, 8

    key = jax.random.PRNGKey(0)
    k_param, k_img, k_cap = jax.random.split(key, 3)

    params = init_params(k_param, word_emb_size, hidden_size, vocab_size)
    img = jax.random.normal(k_img, (batch_size, word_emb_size), jnp.float32)
    cap = jax.random.randint(k_cap, (batch_size, seq_len), 0, vocab_size, jnp.int32)
    caplen = np.array([seq_len, seq_len - 2, seq_len - 1, seq_len - 3], dtype=np.int32)

    predictions, decoder_length = decoder_forward(img, cap, caplen, params)
    predictions = jax.block_until_ready(predictions)

    ref = jax.block_until_ready(reference_forward(img, cap, caplen, params))
    assert predictions.shape == (batch_size, max(decoder_length), vocab_size)
    np.testing.assert_allclose(np.asarray(predictions), np.asarray(ref),
                               rtol=2e-3, atol=2e-3)

    print("KERNEL_OK")
</pallas_src>

<mosaic_0001>
module attributes {stable_mosaic.version = 11 : i64} {
  func.func @gru_fused_kernel(%arg0: i32, %arg1: i32, %arg2: memref<8x16x128xbf16, #tpu.memory_space<vmem>>, %arg3: memref<128x384xbf16, #tpu.memory_space<vmem>>, %arg4: memref<128x384xbf16, #tpu.memory_space<vmem>>, %arg5: memref<1x384xf32, #tpu.memory_space<vmem>>, %arg6: memref<1x128xf32, #tpu.memory_space<vmem>>, %arg7: memref<8x16x128xbf16, #tpu.memory_space<vmem>>, %arg8: memref<16x128xf32, #tpu.memory_space<vmem>>, %arg9: memref<8x16x384xf32, #tpu.memory_space<vmem>>) attributes {dimension_semantics = [#tpu.dimension_semantics<parallel>, #tpu.dimension_semantics<arbitrary>], iteration_bounds = array<i64: 1, 1>, scalar_prefetch = 0 : i64, scratch_operands = 2 : i64, tpu.core_type = #tpu.core_type<tc>, window_params = [{transform_indices = @transform_0, window_bounds = array<i64: 8, 16, 128>}, {pipeline_mode = #tpu.pipeline_mode<synchronous>, transform_indices = @transform_1, window_bounds = array<i64: 128, 384>}, {pipeline_mode = #tpu.pipeline_mode<synchronous>, transform_indices = @transform_2, window_bounds = array<i64: 128, 384>}, {pipeline_mode = #tpu.pipeline_mode<synchronous>, transform_indices = @transform_3, window_bounds = array<i64: 1, 384>}, {pipeline_mode = #tpu.pipeline_mode<synchronous>, transform_indices = @transform_4, window_bounds = array<i64: 1, 128>}, {transform_indices = @transform_5, window_bounds = array<i64: 8, 16, 128>}]} {
    %c0_i32 = arith.constant 0 : i32
    %0 = arith.cmpi eq, %arg1, %c0_i32 : i32
    %1 = arith.extui %0 : i1 to i32
    %c0_i32_0 = arith.constant 0 : i32
    %2 = arith.cmpi ne, %1, %c0_i32_0 : i32
    scf.if %2 {
      %cst_83 = arith.constant 0.000000e+00 : f32
      %314 = vector.broadcast %cst_83 : f32 to vector<16x128xf32>
      %c0_84 = arith.constant 0 : index
      %c0_85 = arith.constant 0 : index
      %315 = vector.load %arg8[%c0_84, %c0_85] : memref<16x128xf32, #tpu.memory_space<vmem>>, vector<16x128xf32>
      tpu.vector_store %arg8[%c0_84, %c0_85], %314 {strides = array<i32>} : memref<16x128xf32, #tpu.memory_space<vmem>>, vector<16x128xf32>,
    } else {
    }
    %c0 = arith.constant 0 : index
    %c0_1 = arith.constant 0 : index
    %c0_2 = arith.constant 0 : index
    %3 = vector.load %arg2[%c0, %c0_1, %c0_2] : memref<8x16x128xbf16, #tpu.memory_space<vmem>>, vector<8x16x128xbf16>
    %4 = vector.shape_cast %3 : vector<8x16x128xbf16> to vector<128x128xbf16>
    %c0_3 = arith.constant 0 : index
    %c0_4 = arith.constant 0 : index
    %5 = vector.load %arg3[%c0_3, %c0_4] : memref<128x384xbf16, #tpu.memory_space<vmem>>, vector<128x384xbf16>
    %cst = arith.constant dense<0.000000e+00> : vector<128x384xf32>
    %6 = tpu.matmul %4, %5, %cst {dimension_numbers = #tpu.dot_dimension_numbers<[1], [0], [0], [1], [0, 0, 1, 1], [], []>} : vector<128x128xbf16>, vector<128x384xbf16>, vector<128x384xf32> -> vector<128x384xf32>
    %c0_5 = arith.constant 0 : index
    %c0_6 = arith.constant 0 : index
    %7 = vector.load %arg5[%c0_5, %c0_6] : memref<1x384xf32, #tpu.memory_space<vmem>>, vector<1x384xf32>
    %8 = vector.broadcast %7 : vector<1x384xf32> to vector<128x384xf32>
    %9 = arith.addf %6, %8 : vector<128x384xf32>
    %10 = vector.shape_cast %9 : vector<128x384xf32> to vector<8x16x384xf32>
    %c0_7 = arith.constant 0 : index
    %c0_8 = arith.constant 0 : index
    %c0_9 = arith.constant 0 : index
    %11 = vector.load %arg9[%c0_7, %c0_8, %c0_9] : memref<8x16x384xf32, #tpu.memory_space<vmem>>, vector<8x16x384xf32>
    tpu.vector_store %arg9[%c0_7, %c0_8, %c0_9], %10 {strides = array<i32>} : memref<8x16x384xf32, #tpu.memory_space<vmem>>, vector<8x16x384xf32>,
    %c0_10 = arith.constant 0 : index
    %c0_11 = arith.constant 0 : index
    %12 = vector.load %arg4[%c0_10, %c0_11] : memref<128x384xbf16, #tpu.memory_space<vmem>>, vector<128x384xbf16>
    %c0_12 = arith.constant 0 : index
    %c0_13 = arith.constant 0 : index
    %13 = vector.load %arg6[%c0_12, %c0_13] : memref<1x128xf32, #tpu.memory_space<vmem>>, vector<1x128xf32>
    %14 = vector.shape_cast %13 : vector<1x128xf32> to vector<1x128xf32>
    %15 = vector.broadcast %14 : vector<1x128xf32> to vector<16x128xf32>
    %c0_14 = arith.constant 0 : index
    %c0_15 = arith.constant 0 : index
    %16 = vector.load %arg8[%c0_14, %c0_15] : memref<16x128xf32, #tpu.memory_space<vmem>>, vector<16x128xf32>
    %c0_i32_16 = arith.constant 0 : i32
    %17 = arith.index_cast %c0_i32_16 : i32 to index
    %c0_17 = arith.constant 0 : index
    %c0_18 = arith.constant 0 : index
    %18 = vector.load %arg9[%17, %c0_17, %c0_18] : memref<8x16x384xf32, #tpu.memory_space<vmem>>, vector<1x16x384xf32>
    %19 = vector.shape_cast %18 : vector<1x16x384xf32> to vector<16x384xf32>
    %20 = arith.truncf %16 : vector<16x128xf32> to vector<16x128xbf16>
    %cst_19 = arith.constant dense<0.000000e+00> : vector<16x384xf32>
    %21 = tpu.matmul %20, %12, %cst_19 {dimension_numbers = #tpu.dot_dimension_numbers<[1], [0], [0], [1], [0, 0, 1, 1], [], []>} : vector<16x128xbf16>, vector<128x384xbf16>, vector<16x384xf32> -> vector<16x384xf32>
    %22 = vector.extract_strided_slice %19 {offsets = [0, 0], sizes = [16, 128], strides = [1, 1]} : vector<16x384xf32> to vector<16x128xf32>
    %23 = vector.extract_strided_slice %21 {offsets = [0, 0], sizes = [16, 128], strides = [1, 1]} : vector<16x384xf32> to vector<16x128xf32>
    %24 = arith.addf %22, %23 : vector<16x128xf32>
    %25 = arith.negf %24 : vector<16x128xf32>
    %26 = math.exp %25 : vector<16x128xf32>
    %cst_20 = arith.constant 1.000000e+00 : f32
    %27 = vector.broadcast %cst_20 : f32 to vector<16x128xf32>
    %28 = arith.addf %27, %26 : vector<16x128xf32>
    %29 = arith.divf %27, %28 : vector<16x128xf32>
    %30 = vector.extract_strided_slice %19 {offsets = [0, 128], sizes = [16, 128], strides = [1, 1]} : vector<16x384xf32> to vector<16x128xf32>
    %31 = vector.extract_strided_slice %21 {offsets = [0, 128], sizes = [16, 128], strides = [1, 1]} : vector<16x384xf32> to vector<16x128xf32>
    %32 = arith.addf %30, %31 : vector<16x128xf32>
    %33 = arith.negf %32 : vector<16x128xf32>
    %34 = math.exp %33 : vector<16x128xf32>
    %cst_21 = arith.constant 1.000000e+00 : f32
    %35 = vector.broadcast %cst_21 : f32 to vector<16x128xf32>
    %36 = arith.addf %35, %34 : vector<16x128xf32>
    %37 = arith.divf %35, %36 : vector<16x128xf32>
    %38 = vector.extract_strided_slice %19 {offsets = [0, 256], sizes = [16, 128], strides = [1, 1]} : vector<16x384xf32> to vector<16x128xf32>
    %39 = vector.extract_strided_slice %21 {offsets = [0, 256], sizes = [16, 128], strides = [1, 1]} : vector<16x384xf32> to vector<16x128xf32>
    %40 = arith.addf %39, %15 : vector<16x128xf32>
    %41 = arith.mulf %29, %40 : vector<16x128xf32>
    %42 = arith.addf %38, %41 : vector<16x128xf32>
    %43 = math.tanh %42 : vector<16x128xf32>
    %cst_22 = arith.constant 1.000000e+00 : f32
    %44 = vector.broadcast %cst_22 : f32 to vector<16x128xf32>
    %45 = arith.subf %44, %37 : vector<16x128xf32>
    %46 = arith.mulf %45, %43 : vector<16x128xf32>
    %47 = arith.mulf %37, %16 : vector<16x128xf32>
    %48 = arith.addf %46, %47 : vector<16x128xf32>
    %49 = arith.truncf %48 : vector<16x128xf32> to vector<16x128xbf16>
    %50 = arith.index_cast %c0_i32_16 : i32 to index
    %c0_23 = arith.constant 0 : index
    %c0_24 = arith.constant 0 : index
    %51 = vector.load %arg7[%50, %c0_23, %c0_24] : memref<8x16x128xbf16, #tpu.memory_space<vmem>>, vector<1x16x128xbf16>
    %52 = vector.shape_cast %51 : vector<1x16x128xbf16> to vector<16x128xbf16>
    %53 = vector.shape_cast %49 : vector<16x128xbf16> to vector<1x16x128xbf16>
    tpu.vector_store %arg7[%50, %c0_23, %c0_24], %53 {strides = array<i32>} : memref<8x16x128xbf16, #tpu.memory_space<vmem>>, vector<1x16x128xbf16>,
    %c1_i32 = arith.constant 1 : i32
    %54 = arith.index_cast %c1_i32 : i32 to index
    %c0_25 = arith.constant 0 : index
    %c0_26 = arith.constant 0 : index
    %55 = vector.load %arg9[%54, %c0_25, %c0_26] : memref<8x16x384xf32, #tpu.memory_space<vmem>>, vector<1x16x384xf32>
    %56 = vector.shape_cast %55 : vector<1x16x384xf32> to vector<16x384xf32>
    %57 = arith.truncf %48 : vector<16x128xf32> to vector<16x128xbf16>
    %cst_27 = arith.constant dense<0.000000e+00> : vector<16x384xf32>
    %58 = tpu.matmul %57, %12, %cst_27 {dimension_numbers = #tpu.dot_dimension_numbers<[1], [0], [0], [1], [0, 0, 1, 1], [], []>} : vector<16x128xbf16>, vector<128x384xbf16>, vector<16x384xf32> -> vector<16x384xf32>
    %59 = vector.extract_strided_slice %56 {offsets = [0, 0], sizes = [16, 128], strides = [1, 1]} : vector<16x384xf32> to vector<16x128xf32>
    %60 = vector.extract_strided_slice %58 {offsets = [0, 0], sizes = [16, 128], strides = [1, 1]} : vector<16x384xf32> to vector<16x128xf32>
    %61 = arith.addf %59, %60 : vector<16x128xf32>
    %62 = arith.negf %61 : vector<16x128xf32>
    %63 = math.exp %62 : vector<16x128xf32>
    %cst_28 = arith.constant 1.000000e+00 : f32
    %64 = vector.broadcast %cst_28 : f32 to vector<16x128xf32>
    %65 = arith.addf %64, %63 : vector<16x128xf32>
    %66 = arith.divf %64, %65 : vector<16x128xf32>
    %67 = vector.extract_strided_slice %56 {offsets = [0, 128], sizes = [16, 128], strides = [1, 1]} : vector<16x384xf32> to vector<16x128xf32>
    %68 = vector.extract_strided_slice %58 {offsets = [0, 128], sizes = [16, 128], strides = [1, 1]} : vector<16x384xf32> to vector<16x128xf32>
    %69 = arith.addf %67, %68 : vector<16x128xf32>
    %70 = arith.negf %69 : vector<16x128xf32>
    %71 = math.exp %70 : vector<16x128xf32>
    %cst_29 = arith.constant 1.000000e+00 : f32
    %72 = vector.broadcast %cst_29 : f32 to vector<16x128xf32>
    %73 = arith.addf %72, %71 : vector<16x128xf32>
    %74 = arith.divf %72, %73 : vector<16x128xf32>
    %75 = vector.extract_strided_slice %56 {offsets = [0, 256], sizes = [16, 128], strides = [1, 1]} : vector<16x384xf32> to vector<16x128xf32>
    %76 = vector.extract_strided_slice %58 {offsets = [0, 256], sizes = [16, 128], strides = [1, 1]} : vector<16x384xf32> to vector<16x128xf32>
    %77 = arith.addf %76, %15 : vector<16x128xf32>
    %78 = arith.mulf %66, %77 : vector<16x128xf32>
    %79 = arith.addf %75, %78 : vector<16x128xf32>
    %80 = math.tanh %79 : vector<16x128xf32>
    %cst_30 = arith.constant 1.000000e+00 : f32
    %81 = vector.broadcast %cst_30 : f32 to vector<16x128xf32>
    %82 = arith.subf %81, %74 : vector<16x128xf32>
    %83 = arith.mulf %82, %80 : vector<16x128xf32>
    %84 = arith.mulf %74, %48 : vector<16x128xf32>
    %85 = arith.addf %83, %84 : vector<16x128xf32>
    %86 = arith.truncf %85 : vector<16x128xf32> to vector<16x128xbf16>
    %87 = arith.index_cast %c1_i32 : i32 to index
    %c0_31 = arith.constant 0 : index
    %c0_32 = arith.constant 0 : index
    %88 = vector.load %arg7[%87, %c0_31, %c0_32] : memref<8x16x128xbf16, #tpu.memory_space<vmem>>, vector<1x16x128xbf16>
    %89 = vector.shape_cast %88 : vector<1x16x128xbf16> to vector<16x128xbf16>
    %90 = vector.shape_cast %86 : vector<16x128xbf16> to vector<1x16x128xbf16>
    tpu.vector_store %arg7[%87, %c0_31, %c0_32], %90 {strides = array<i32>} : memref<8x16x128xbf16, #tpu.memory_space<vmem>>, vector<1x16x128xbf16>,
    %c2_i32 = arith.constant 2 : i32
    %91 = arith.index_cast %c2_i32 : i32 to index
    %c0_33 = arith.constant 0 : index
    %c0_34 = arith.constant 0 : index
    %92 = vector.load %arg9[%91, %c0_33, %c0_34] : memref<8x16x384xf32, #tpu.memory_space<vmem>>, vector<1x16x384xf32>
    %93 = vector.shape_cast %92 : vector<1x16x384xf32> to vector<16x384xf32>
    %94 = arith.truncf %85 : vector<16x128xf32> to vector<16x128xbf16>
    %cst_35 = arith.constant dense<0.000000e+00> : vector<16x384xf32>
    %95 = tpu.matmul %94, %12, %cst_35 {dimension_numbers = #tpu.dot_dimension_numbers<[1], [0], [0], [1], [0, 0, 1, 1], [], []>} : vector<16x128xbf16>, vector<128x384xbf16>, vector<16x384xf32> -> vector<16x384xf32>
    %96 = vector.extract_strided_slice %93 {offsets = [0, 0], sizes = [16, 128], strides = [1, 1]} : vector<16x384xf32> to vector<16x128xf32>
    %97 = vector.extract_strided_slice %95 {offsets = [0, 0], sizes = [16, 128], strides = [1, 1]} : vector<16x384xf32> to vector<16x128xf32>
    %98 = arith.addf %96, %97 : vector<16x128xf32>
    %99 = arith.negf %98 : vector<16x128xf32>
    %100 = math.exp %99 : vector<16x128xf32>
    %cst_36 = arith.constant 1.000000e+00 : f32
    %101 = vector.broadcast %cst_36 : f32 to vector<16x128xf32>
    %102 = arith.addf %101, %100 : vector<16x128xf32>
    %103 = arith.divf %101, %102 : vector<16x128xf32>
    %104 = vector.extract_strided_slice %93 {offsets = [0, 128], sizes = [16, 128], strides = [1, 1]} : vector<16x384xf32> to vector<16x128xf32>
    %105 = vector.extract_strided_slice %95 {offsets = [0, 128], sizes = [16, 128], strides = [1, 1]} : vector<16x384xf32> to vector<16x128xf32>
    %106 = arith.addf %104, %105 : vector<16x128xf32>
    %107 = arith.negf %106 : vector<16x128xf32>
    %108 = math.exp %107 : vector<16x128xf32>
    %cst_37 = arith.constant 1.000000e+00 : f32
    %109 = vector.broadcast %cst_37 : f32 to vector<16x128xf32>
    %110 = arith.addf %109, %108 : vector<16x128xf32>
    %111 = arith.divf %109, %110 : vector<16x128xf32>
    %112 = vector.extract_strided_slice %93 {offsets = [0, 256], sizes = [16, 128], strides = [1, 1]} : vector<16x384xf32> to vector<16x128xf32>
    %113 = vector.extract_strided_slice %95 {offsets = [0, 256], sizes = [16, 128], strides = [1, 1]} : vector<16x384xf32> to vector<16x128xf32>
    %114 = arith.addf %113, %15 : vector<16x128xf32>
    %115 = arith.mulf %103, %114 : vector<16x128xf32>
    %116 = arith.addf %112, %115 : vector<16x128xf32>
    %117 = math.tanh %116 : vector<16x128xf32>
    %cst_38 = arith.constant 1.000000e+00 : f32
    %118 = vector.broadcast %cst_38 : f32 to vector<16x128xf32>
    %119 = arith.subf %118, %111 : vector<16x128xf32>
    %120 = arith.mulf %119, %117 : vector<16x128xf32>
    %121 = arith.mulf %111, %85 : vector<16x128xf32>
    %122 = arith.addf %120, %121 : vector<16x128xf32>
    %123 = arith.truncf %122 : vector<16x128xf32> to vector<16x128xbf16>
    %124 = arith.index_cast %c2_i32 : i32 to index
    %c0_39 = arith.constant 0 : index
    %c0_40 = arith.constant 0 : index
    %125 = vector.load %arg7[%124, %c0_39, %c0_40] : memref<8x16x128xbf16, #tpu.memory_space<vmem>>, vector<1x16x128xbf16>
    %126 = vector.shape_cast %125 : vector<1x16x128xbf16> to vector<16x128xbf16>
    %127 = vector.shape_cast %123 : vector<16x128xbf16> to vector<1x16x128xbf16>
    tpu.vector_store %arg7[%124, %c0_39, %c0_40], %127 {strides = array<i32>} : memref<8x16x128xbf16, #tpu.memory_space<vmem>>, vector<1x16x128xbf16>,
    %c3_i32 = arith.constant 3 : i32
    %128 = arith.index_cast %c3_i32 : i32 to index
    %c0_41 = arith.constant 0 : index
    %c0_42 = arith.constant 0 : index
    %129 = vector.load %arg9[%128, %c0_41, %c0_42] : memref<8x16x384xf32, #tpu.memory_space<vmem>>, vector<1x16x384xf32>
    %130 = vector.shape_cast %129 : vector<1x16x384xf32> to vector<16x384xf32>
    %131 = arith.truncf %122 : vector<16x128xf32> to vector<16x128xbf16>
    %cst_43 = arith.constant dense<0.000000e+00> : vector<16x384xf32>
    %132 = tpu.matmul %131, %12, %cst_43 {dimension_numbers = #tpu.dot_dimension_numbers<[1], [0], [0], [1], [0, 0, 1, 1], [], []>} : vector<16x128xbf16>, vector<128x384xbf16>, vector<16x384xf32> -> vector<16x384xf32>
    %133 = vector.extract_strided_slice %130 {offsets = [0, 0], sizes = [16, 128], strides = [1, 1]} : vector<16x384xf32> to vector<16x128xf32>
    %134 = vector.extract_strided_slice %132 {offsets = [0, 0], sizes = [16, 128], strides = [1, 1]} : vector<16x384xf32> to vector<16x128xf32>
    %135 = arith.addf %133, %134 : vector<16x128xf32>
    %136 = arith.negf %135 : vector<16x128xf32>
    %137 = math.exp %136 : vector<16x128xf32>
    %cst_44 = arith.constant 1.000000e+00 : f32
    %138 = vector.broadcast %cst_44 : f32 to vector<16x128xf32>
    %139 = arith.addf %138, %137 : vector<16x128xf32>
    %140 = arith.divf %138, %139 : vector<16x128xf32>
    %141 = vector.extract_strided_slice %130 {offsets = [0, 128], sizes = [16, 128], strides = [1, 1]} : vector<16x384xf32> to vector<16x128xf32>
    %142 = vector.extract_strided_slice %132 {offsets = [0, 128], sizes = [16, 128], strides = [1, 1]} : vector<16x384xf32> to vector<16x128xf32>
    %143 = arith.addf %141, %142 : vector<16x128xf32>
    %144 = arith.negf %143 : vector<16x128xf32>
    %145 = math.exp %144 : vector<16x128xf32>
    %cst_45 = arith.constant 1.000000e+00 : f32
    %146 = vector.broadcast %cst_45 : f32 to vector<16x128xf32>
    %147 = arith.addf %146, %145 : vector<16x128xf32>
    %148 = arith.divf %146, %147 : vector<16x128xf32>
    %149 = vector.extract_strided_slice %130 {offsets = [0, 256], sizes = [16, 128], strides = [1, 1]} : vector<16x384xf32> to vector<16x128xf32>
    %150 = vector.extract_strided_slice %132 {offsets = [0, 256], sizes = [16, 128], strides = [1, 1]} : vector<16x384xf32> to vector<16x128xf32>
    %151 = arith.addf %150, %15 : vector<16x128xf32>
    %152 = arith.mulf %140, %151 : vector<16x128xf32>
    %153 = arith.addf %149, %152 : vector<16x128xf32>
    %154 = math.tanh %153 : vector<16x128xf32>
    %cst_46 = arith.constant 1.000000e+00 : f32
    %155 = vector.broadcast %cst_46 : f32 to vector<16x128xf32>
    %156 = arith.subf %155, %148 : vector<16x128xf32>
    %157 = arith.mulf %156, %154 : vector<16x128xf32>
    %158 = arith.mulf %148, %122 : vector<16x128xf32>
    %159 = arith.addf %157, %158 : vector<16x128xf32>
    %160 = arith.truncf %159 : vector<16x128xf32> to vector<16x128xbf16>
    %161 = arith.index_cast %c3_i32 : i32 to index
    %c0_47 = arith.constant 0 : index
    %c0_48 = arith.constant 0 : index
    %162 = vector.load %arg7[%161, %c0_47, %c0_48] : memref<8x16x128xbf16, #tpu.memory_space<vmem>>, vector<1x16x128xbf16>
    %163 = vector.shape_cast %162 : vector<1x16x128xbf16> to vector<16x128xbf16>
    %164 = vector.shape_cast %160 : vector<16x128xbf16> to vector<1x16x128xbf16>
    tpu.vector_store %arg7[%161, %c0_47, %c0_48], %164 {strides = array<i32>} : memref<8x16x128xbf16, #tpu.memory_space<vmem>>, vector<1x16x128xbf16>,
    %c4_i32 = arith.constant 4 : i32
    %165 = arith.index_cast %c4_i32 : i32 to index
    %c0_49 = arith.constant 0 : index
    %c0_50 = arith.constant 0 : index
    %166 = vector.load %arg9[%165, %c0_49, %c0_50] : memref<8x16x384xf32, #tpu.memory_space<vmem>>, vector<1x16x384xf32>
    %167 = vector.shape_cast %166 : vector<1x16x384xf32> to vector<16x384xf32>
    %168 = arith.truncf %159 : vector<16x128xf32> to vector<16x128xbf16>
    %cst_51 = arith.constant dense<0.000000e+00> : vector<16x384xf32>
    %169 = tpu.matmul %168, %12, %cst_51 {dimension_numbers = #tpu.dot_dimension_numbers<[1], [0], [0], [1], [0, 0, 1, 1], [], []>} : vector<16x128xbf16>, vector<128x384xbf16>, vector<16x384xf32> -> vector<16x384xf32>
    %170 = vector.extract_strided_slice %167 {offsets = [0, 0], sizes = [16, 128], strides = [1, 1]} : vector<16x384xf32> to vector<16x128xf32>
    %171 = vector.extract_strided_slice %169 {offsets = [0, 0], sizes = [16, 128], strides = [1, 1]} : vector<16x384xf32> to vector<16x128xf32>
    %172 = arith.addf %170, %171 : vector<16x128xf32>
    %173 = arith.negf %172 : vector<16x128xf32>
    %174 = math.exp %173 : vector<16x128xf32>
    %cst_52 = arith.constant 1.000000e+00 : f32
    %175 = vector.broadcast %cst_52 : f32 to vector<16x128xf32>
    %176 = arith.addf %175, %174 : vector<16x128xf32>
    %177 = arith.divf %175, %176 : vector<16x128xf32>
    %178 = vector.extract_strided_slice %167 {offsets = [0, 128], sizes = [16, 128], strides = [1, 1]} : vector<16x384xf32> to vector<16x128xf32>
    %179 = vector.extract_strided_slice %169 {offsets = [0, 128], sizes = [16, 128], strides = [1, 1]} : vector<16x384xf32> to vector<16x128xf32>
    %180 = arith.addf %178, %179 : vector<16x128xf32>
    %181 = arith.negf %180 : vector<16x128xf32>
    %182 = math.exp %181 : vector<16x128xf32>
    %cst_53 = arith.constant 1.000000e+00 : f32
    %183 = vector.broadcast %cst_53 : f32 to vector<16x128xf32>
    %184 = arith.addf %183, %182 : vector<16x128xf32>
    %185 = arith.divf %183, %184 : vector<16x128xf32>
    %186 = vector.extract_strided_slice %167 {offsets = [0, 256], sizes = [16, 128], strides = [1, 1]} : vector<16x384xf32> to vector<16x128xf32>
    %187 = vector.extract_strided_slice %169 {offsets = [0, 256], sizes = [16, 128], strides = [1, 1]} : vector<16x384xf32> to vector<16x128xf32>
    %188 = arith.addf %187, %15 : vector<16x128xf32>
    %189 = arith.mulf %177, %188 : vector<16x128xf32>
    %190 = arith.addf %186, %189 : vector<16x128xf32>
    %191 = math.tanh %190 : vector<16x128xf32>
    %cst_54 = arith.constant 1.000000e+00 : f32
    %192 = vector.broadcast %cst_54 : f32 to vector<16x128xf32>
    %193 = arith.subf %192, %185 : vector<16x128xf32>
    %194 = arith.mulf %193, %191 : vector<16x128xf32>
    %195 = arith.mulf %185, %159 : vector<16x128xf32>
    %196 = arith.addf %194, %195 : vector<16x128xf32>
    %197 = arith.truncf %196 : vector<16x128xf32> to vector<16x128xbf16>
    %198 = arith.index_cast %c4_i32 : i32 to index
    %c0_55 = arith.constant 0 : index
    %c0_56 = arith.constant 0 : index
    %199 = vector.load %arg7[%198, %c0_55, %c0_56] : memref<8x16x128xbf16, #tpu.memory_space<vmem>>, vector<1x16x128xbf16>
    %200 = vector.shape_cast %199 : vector<1x16x128xbf16> to vector<16x128xbf16>
    %201 = vector.shape_cast %197 : vector<16x128xbf16> to vector<1x16x128xbf16>
    tpu.vector_store %arg7[%198, %c0_55, %c0_56], %201 {strides = array<i32>} : memref<8x16x128xbf16, #tpu.memory_space<vmem>>, vector<1x16x128xbf16>,
    %c5_i32 = arith.constant 5 : i32
    %202 = arith.index_cast %c5_i32 : i32 to index
    %c0_57 = arith.constant 0 : index
    %c0_58 = arith.constant 0 : index
    %203 = vector.load %arg9[%202, %c0_57, %c0_58] : memref<8x16x384xf32, #tpu.memory_space<vmem>>, vector<1x16x384xf32>
    %204 = vector.shape_cast %203 : vector<1x16x384xf32> to vector<16x384xf32>
    %205 = arith.truncf %196 : vector<16x128xf32> to vector<16x128xbf16>
    %cst_59 = arith.constant dense<0.000000e+00> : vector<16x384xf32>
    %206 = tpu.matmul %205, %12, %cst_59 {dimension_numbers = #tpu.dot_dimension_numbers<[1], [0], [0], [1], [0, 0, 1, 1], [], []>} : vector<16x128xbf16>, vector<128x384xbf16>, vector<16x384xf32> -> vector<16x384xf32>
    %207 = vector.extract_strided_slice %204 {offsets = [0, 0], sizes = [16, 128], strides = [1, 1]} : vector<16x384xf32> to vector<16x128xf32>
    %208 = vector.extract_strided_slice %206 {offsets = [0, 0], sizes = [16, 128], strides = [1, 1]} : vector<16x384xf32> to vector<16x128xf32>
    %209 = arith.addf %207, %208 : vector<16x128xf32>
    %210 = arith.negf %209 : vector<16x128xf32>
    %211 = math.exp %210 : vector<16x128xf32>
    %cst_60 = arith.constant 1.000000e+00 : f32
    %212 = vector.broadcast %cst_60 : f32 to vector<16x128xf32>
    %213 = arith.addf %212, %211 : vector<16x128xf32>
    %214 = arith.divf %212, %213 : vector<16x128xf32>
    %215 = vector.extract_strided_slice %204 {offsets = [0, 128], sizes = [16, 128], strides = [1, 1]} : vector<16x384xf32> to vector<16x128xf32>
    %216 = vector.extract_strided_slice %206 {offsets = [0, 128], sizes = [16, 128], strides = [1, 1]} : vector<16x384xf32> to vector<16x128xf32>
    %217 = arith.addf %215, %216 : vector<16x128xf32>
    %218 = arith.negf %217 : vector<16x128xf32>
    %219 = math.exp %218 : vector<16x128xf32>
    %cst_61 = arith.constant 1.000000e+00 : f32
    %220 = vector.broadcast %cst_61 : f32 to vector<16x128xf32>
    %221 = arith.addf %220, %219 : vector<16x128xf32>
    %222 = arith.divf %220, %221 : vector<16x128xf32>
    %223 = vector.extract_strided_slice %204 {offsets = [0, 256], sizes = [16, 128], strides = [1, 1]} : vector<16x384xf32> to vector<16x128xf32>
    %224 = vector.extract_strided_slice %206 {offsets = [0, 256], sizes = [16, 128], strides = [1, 1]} : vector<16x384xf32> to vector<16x128xf32>
    %225 = arith.addf %224, %15 : vector<16x128xf32>
    %226 = arith.mulf %214, %225 : vector<16x128xf32>
    %227 = arith.addf %223, %226 : vector<16x128xf32>
    %228 = math.tanh %227 : vector<16x128xf32>
    %cst_62 = arith.constant 1.000000e+00 : f32
    %229 = vector.broadcast %cst_62 : f32 to vector<16x128xf32>
    %230 = arith.subf %229, %222 : vector<16x128xf32>
    %231 = arith.mulf %230, %228 : vector<16x128xf32>
    %232 = arith.mulf %222, %196 : vector<16x128xf32>
    %233 = arith.addf %231, %232 : vector<16x128xf32>
    %234 = arith.truncf %233 : vector<16x128xf32> to vector<16x128xbf16>
    %235 = arith.index_cast %c5_i32 : i32 to index
    %c0_63 = arith.constant 0 : index
    %c0_64 = arith.constant 0 : index
    %236 = vector.load %arg7[%235, %c0_63, %c0_64] : memref<8x16x128xbf16, #tpu.memory_space<vmem>>, vector<1x16x128xbf16>
    %237 = vector.shape_cast %236 : vector<1x16x128xbf16> to vector<16x128xbf16>
    %238 = vector.shape_cast %234 : vector<16x128xbf16> to vector<1x16x128xbf16>
    tpu.vector_store %arg7[%235, %c0_63, %c0_64], %238 {strides = array<i32>} : memref<8x16x128xbf16, #tpu.memory_space<vmem>>, vector<1x16x128xbf16>,
    %c6_i32 = arith.constant 6 : i32
    %239 = arith.index_cast %c6_i32 : i32 to index
    %c0_65 = arith.constant 0 : index
    %c0_66 = arith.constant 0 : index
    %240 = vector.load %arg9[%239, %c0_65, %c0_66] : memref<8x16x384xf32, #tpu.memory_space<vmem>>, vector<1x16x384xf32>
    %241 = vector.shape_cast %240 : vector<1x16x384xf32> to vector<16x384xf32>
    %242 = arith.truncf %233 : vector<16x128xf32> to vector<16x128xbf16>
    %cst_67 = arith.constant dense<0.000000e+00> : vector<16x384xf32>
    %243 = tpu.matmul %242, %12, %cst_67 {dimension_numbers = #tpu.dot_dimension_numbers<[1], [0], [0], [1], [0, 0, 1, 1], [], []>} : vector<16x128xbf16>, vector<128x384xbf16>, vector<16x384xf32> -> vector<16x384xf32>
    %244 = vector.extract_strided_slice %241 {offsets = [0, 0], sizes = [16, 128], strides = [1, 1]} : vector<16x384xf32> to vector<16x128xf32>
    %245 = vector.extract_strided_slice %243 {offsets = [0, 0], sizes = [16, 128], strides = [1, 1]} : vector<16x384xf32> to vector<16x128xf32>
    %246 = arith.addf %244, %245 : vector<16x128xf32>
    %247 = arith.negf %246 : vector<16x128xf32>
    %248 = math.exp %247 : vector<16x128xf32>
    %cst_68 = arith.constant 1.000000e+00 : f32
    %249 = vector.broadcast %cst_68 : f32 to vector<16x128xf32>
    %250 = arith.addf %249, %248 : vector<16x128xf32>
    %251 = arith.divf %249, %250 : vector<16x128xf32>
    %252 = vector.extract_strided_slice %241 {offsets = [0, 128], sizes = [16, 128], strides = [1, 1]} : vector<16x384xf32> to vector<16x128xf32>
    %253 = vector.extract_strided_slice %243 {offsets = [0, 128], sizes = [16, 128], strides = [1, 1]} : vector<16x384xf32> to vector<16x128xf32>
    %254 = arith.addf %252, %253 : vector<16x128xf32>
    %255 = arith.negf %254 : vector<16x128xf32>
    %256 = math.exp %255 : vector<16x128xf32>
    %cst_69 = arith.constant 1.000000e+00 : f32
    %257 = vector.broadcast %cst_69 : f32 to vector<16x128xf32>
    %258 = arith.addf %257, %256 : vector<16x128xf32>
    %259 = arith.divf %257, %258 : vector<16x128xf32>
    %260 = vector.extract_strided_slice %241 {offsets = [0, 256], sizes = [16, 128], strides = [1, 1]} : vector<16x384xf32> to vector<16x128xf32>
    %261 = vector.extract_strided_slice %243 {offsets = [0, 256], sizes = [16, 128], strides = [1, 1]} : vector<16x384xf32> to vector<16x128xf32>
    %262 = arith.addf %261, %15 : vector<16x128xf32>
    %263 = arith.mulf %251, %262 : vector<16x128xf32>
    %264 = arith.addf %260, %263 : vector<16x128xf32>
    %265 = math.tanh %264 : vector<16x128xf32>
    %cst_70 = arith.constant 1.000000e+00 : f32
    %266 = vector.broadcast %cst_70 : f32 to vector<16x128xf32>
    %267 = arith.subf %266, %259 : vector<16x128xf32>
    %268 = arith.mulf %267, %265 : vector<16x128xf32>
    %269 = arith.mulf %259, %233 : vector<16x128xf32>
    %270 = arith.addf %268, %269 : vector<16x128xf32>
    %271 = arith.truncf %270 : vector<16x128xf32> to vector<16x128xbf16>
    %272 = arith.index_cast %c6_i32 : i32 to index
    %c0_71 = arith.constant 0 : index
    %c0_72 = arith.constant 0 : index
    %273 = vector.load %arg7[%272, %c0_71, %c0_72] : memref<8x16x128xbf16, #tpu.memory_space<vmem>>, vector<1x16x128xbf16>
    %274 = vector.shape_cast %273 : vector<1x16x128xbf16> to vector<16x128xbf16>
    %275 = vector.shape_cast %271 : vector<16x128xbf16> to vector<1x16x128xbf16>
    tpu.vector_store %arg7[%272, %c0_71, %c0_72], %275 {strides = array<i32>} : memref<8x16x128xbf16, #tpu.memory_space<vmem>>, vector<1x16x128xbf16>,
    %c7_i32 = arith.constant 7 : i32
    %276 = arith.index_cast %c7_i32 : i32 to index
    %c0_73 = arith.constant 0 : index
    %c0_74 = arith.constant 0 : index
    %277 = vector.load %arg9[%276, %c0_73, %c0_74] : memref<8x16x384xf32, #tpu.memory_space<vmem>>, vector<1x16x384xf32>
    %278 = vector.shape_cast %277 : vector<1x16x384xf32> to vector<16x384xf32>
    %279 = arith.truncf %270 : vector<16x128xf32> to vector<16x128xbf16>
    %cst_75 = arith.constant dense<0.000000e+00> : vector<16x384xf32>
    %280 = tpu.matmul %279, %12, %cst_75 {dimension_numbers = #tpu.dot_dimension_numbers<[1], [0], [0], [1], [0, 0, 1, 1], [], []>} : vector<16x128xbf16>, vector<128x384xbf16>, vector<16x384xf32> -> vector<16x384xf32>
    %281 = vector.extract_strided_slice %278 {offsets = [0, 0], sizes = [16, 128], strides = [1, 1]} : vector<16x384xf32> to vector<16x128xf32>
    %282 = vector.extract_strided_slice %280 {offsets = [0, 0], sizes = [16, 128], strides = [1, 1]} : vector<16x384xf32> to vector<16x128xf32>
    %283 = arith.addf %281, %282 : vector<16x128xf32>
    %284 = arith.negf %283 : vector<16x128xf32>
    %285 = math.exp %284 : vector<16x128xf32>
    %cst_76 = arith.constant 1.000000e+00 : f32
    %286 = vector.broadcast %cst_76 : f32 to vector<16x128xf32>
    %287 = arith.addf %286, %285 : vector<16x128xf32>
    %288 = arith.divf %286, %287 : vector<16x128xf32>
    %289 = vector.extract_strided_slice %278 {offsets = [0, 128], sizes = [16, 128], strides = [1, 1]} : vector<16x384xf32> to vector<16x128xf32>
    %290 = vector.extract_strided_slice %280 {offsets = [0, 128], sizes = [16, 128], strides = [1, 1]} : vector<16x384xf32> to vector<16x128xf32>
    %291 = arith.addf %289, %290 : vector<16x128xf32>
    %292 = arith.negf %291 : vector<16x128xf32>
    %293 = math.exp %292 : vector<16x128xf32>
    %cst_77 = arith.constant 1.000000e+00 : f32
    %294 = vector.broadcast %cst_77 : f32 to vector<16x128xf32>
    %295 = arith.addf %294, %293 : vector<16x128xf32>
    %296 = arith.divf %294, %295 : vector<16x128xf32>
    %297 = vector.extract_strided_slice %278 {offsets = [0, 256], sizes = [16, 128], strides = [1, 1]} : vector<16x384xf32> to vector<16x128xf32>
    %298 = vector.extract_strided_slice %280 {offsets = [0, 256], sizes = [16, 128], strides = [1, 1]} : vector<16x384xf32> to vector<16x128xf32>
    %299 = arith.addf %298, %15 : vector<16x128xf32>
    %300 = arith.mulf %288, %299 : vector<16x128xf32>
    %301 = arith.addf %297, %300 : vector<16x128xf32>
    %302 = math.tanh %301 : vector<16x128xf32>
    %cst_78 = arith.constant 1.000000e+00 : f32
    %303 = vector.broadcast %cst_78 : f32 to vector<16x128xf32>
    %304 = arith.subf %303, %296 : vector<16x128xf32>
    %305 = arith.mulf %304, %302 : vector<16x128xf32>
    %306 = arith.mulf %296, %270 : vector<16x128xf32>
    %307 = arith.addf %305, %306 : vector<16x128xf32>
    %308 = arith.truncf %307 : vector<16x128xf32> to vector<16x128xbf16>
    %309 = arith.index_cast %c7_i32 : i32 to index
    %c0_79 = arith.constant 0 : index
    %c0_80 = arith.constant 0 : index
    %310 = vector.load %arg7[%309, %c0_79, %c0_80] : memref<8x16x128xbf16, #tpu.memory_space<vmem>>, vector<1x16x128xbf16>
    %311 = vector.shape_cast %310 : vector<1x16x128xbf16> to vector<16x128xbf16>
    %312 = vector.shape_cast %308 : vector<16x128xbf16> to vector<1x16x128xbf16>
    tpu.vector_store %arg7[%309, %c0_79, %c0_80], %312 {strides = array<i32>} : memref<8x16x128xbf16, #tpu.memory_space<vmem>>, vector<1x16x128xbf16>,
    %c8_i32 = arith.constant 8 : i32
    %c0_81 = arith.constant 0 : index
    %c0_82 = arith.constant 0 : index
    %313 = vector.load %arg8[%c0_81, %c0_82] : memref<16x128xf32, #tpu.memory_space<vmem>>, vector<16x128xf32>
    tpu.vector_store %arg8[%c0_81, %c0_82], %307 {strides = array<i32>} : memref<16x128xf32, #tpu.memory_space<vmem>>, vector<16x128xf32>,
    return
  }
  func.func @transform_0(%arg0: i32, %arg1: i32) -> (i32, i32, i32) {
    %c0_i32 = arith.constant 0 : i32
    %c0_i32_0 = arith.constant 0 : i32
    return %arg1, %arg0, %c0_i32 : i32, i32, i32
  }
  func.func @transform_1(%arg0: i32, %arg1: i32) -> (i32, i32) {
    %c0_i32 = arith.constant 0 : i32
    %c0_i32_0 = arith.constant 0 : i32
    %c0_i32_1 = arith.constant 0 : i32
    return %c0_i32, %c0_i32_0 : i32, i32
  }
  func.func @transform_2(%arg0: i32, %arg1: i32) -> (i32, i32) {
    %c0_i32 = arith.constant 0 : i32
    %c0_i32_0 = arith.constant 0 : i32
    %c0_i32_1 = arith.constant 0 : i32
    return %c0_i32, %c0_i32_0 : i32, i32
  }
  func.func @transform_3(%arg0: i32, %arg1: i32) -> (i32, i32) {
    %c0_i32 = arith.constant 0 : i32
    %c0_i32_0 = arith.constant 0 : i32
    %c0_i32_1 = arith.constant 0 : i32
    return %c0_i32, %c0_i32_0 : i32, i32
  }
  func.func @transform_4(%arg0: i32, %arg1: i32) -> (i32, i32) {
    %c0_i32 = arith.constant 0 : i32
    %c0_i32_0 = arith.constant 0 : i32
    %c0_i32_1 = arith.constant 0 : i32
    return %c0_i32, %c0_i32_0 : i32, i32
  }
  func.func @transform_5(%arg0: i32, %arg1: i32) -> (i32, i32, i32) {
    %c0_i32 = arith.constant 0 : i32
    %c0_i32_0 = arith.constant 0 : i32
    return %arg1, %arg0, %c0_i32 : i32, i32, i32
  }
}

</mosaic_0001>

<llo_original>
// kernel: tpu_custom_call.1
$region0: #{tpu_custom_call.1}
  #allocation0 [shape = 'u32[]', space=smem, size = 0x4, offset = 0x4, fixed_abs, tag = 'smem constant byte address 0x4 - core index']
  #allocation1 [shape = 'u32[144,128]{1,0:T(1,128)}', space=vmem, size = 0x12000, scoped, tag = 'internal scratch']
  #allocation2 [shape = 'f32[16,128]{1,0:T(8,128)}', space=vmem, size = 0x2000, scoped, tag = 'scratch operand']
  #allocation3 [shape = 'f32[8,16,384]{2,1,0:T(8,128)}', space=vmem, size = 0x30000, scoped, tag = 'scratch operand']
  %s0 = inlined_call_operand.hbm [shape: bf16[8,16,128], index: 0, kind: input, shape index: {}]
  %s1 = inlined_call_operand.hbm [shape: bf16[128,384], index: 1, kind: input, shape index: {}]
  %s2 = inlined_call_operand.hbm [shape: bf16[128,384], index: 2, kind: input, shape index: {}]
  %s3 = inlined_call_operand.vmem [shape: f32[1,384], index: 3, kind: input, shape index: {}]
  %s4 = inlined_call_operand.vmem [shape: f32[1,128], index: 4, kind: input, shape index: {}]
  %s5 = inlined_call_operand.hbm [shape: bf16[8,16,128], index: 5, kind: output, shape index: {}]
  %s6 = sld [smem:[#allocation0]]
  $region46: #{tpu_custom_call.1} parent=0
    _
  %s8 = ssub.s32 1, %s6
  %s9 = scalar_select 0, %s8, %s6
  $region1: #{tpu_custom_call.1} parent=0
    #allocation4 [shape = 'u8[32768]{0}', space=vmem, size = 0x8000, scoped, tag = 'input window, operand 0, single buffered']
    #allocation5 [shape = 's32[1]{0}', space=sflag, size = 0x4, scoped, tag = 'scoped memory for tpu_custom_call.1']
    #allocation6 [shape = 's32[1]{0}', space=sflag, size = 0x4, scoped, tag = 'scoped memory for tpu_custom_call.1']
    #allocation7 [shape = 'u8[98304]{0}', space=vmem, size = 0x18000, scoped, tag = 'input window, operand 1, single buffered']
    #allocation8 [shape = 's32[1]{0}', space=sflag, size = 0x4, scoped, tag = 'scoped memory for tpu_custom_call.1']
    #allocation9 [shape = 'u8[98304]{0}', space=vmem, size = 0x18000, scoped, tag = 'input window, operand 2, single buffered']
    #allocation10 [shape = 'u8[32768]{0}', space=vmem, size = 0x8000, scoped, tag = 'output window, operand 0, single buffered']
    %10 = vsyncpa [#allocation5], 0
    %11 = vsyncpa [#allocation8], 0
    %12 = vsyncpa [#allocation6], 0
    // Predicated region
    $region2: #{tpu_custom_call.1} parent=1 // pred_check
      _
    $region3: #{tpu_custom_call.1} parent=1 // pred_check_branch
      %14 = sbr.rel (0) target = $region5
    $region4: #{tpu_custom_call.1} parent=1 // pred_region
      %s16 = ssub.s32 1024, 1024
      %17 = vsyncadd [#allocation5], %s16
      %s18 = sshll.u32 [#allocation4], 4
      %s19 = int_to_ptr.vmem [resolvable:$true] %s18
      %24 = dma.hbm_to_vmem [thread:$0]  %s0, 1024, %s19, [#allocation5], 64, 64, 4
    $region5: #{tpu_custom_call.1} parent=1 // pred_fallthru
      _
    // Predicated region
    $region6: #{tpu_custom_call.1} parent=1 // pred_check
      _
    $region7: #{tpu_custom_call.1} parent=1 // pred_check_branch
      %26 = sbr.rel (0) target = $region9
    $region8: #{tpu_custom_call.1} parent=1 // pred_region
      %s28 = ssub.s32 3072, 3072
      %29 = vsyncadd [#allocation8], %s28
      %s30 = sshll.u32 [#allocation7], 4
      %s31 = int_to_ptr.vmem [resolvable:$true] %s30
      %36 = dma.hbm_to_vmem [thread:$0]  %s1, 3072, %s31, [#allocation8], 192, 192, 12
    $region9: #{tpu_custom_call.1} parent=1 // pred_fallthru
      _
    // Predicated region
    $region10: #{tpu_custom_call.1} parent=1 // pred_check
      _
    $region11: #{tpu_custom_call.1} parent=1 // pred_check_branch
      %38 = sbr.rel (0) target = $region13
    $region12: #{tpu_custom_call.1} parent=1 // pred_region
      %s40 = ssub.s32 3072, 3072
      %41 = vsyncadd [#allocation8], %s40
      %s42 = sshll.u32 [#allocation9], 4
      %s43 = int_to_ptr.vmem [resolvable:$true] %s42
      %48 = dma.hbm_to_vmem [thread:$0]  %s2, 3072, %s43, [#allocation8], 192, 192, 12
    $region13: #{tpu_custom_call.1} parent=1 // pred_fallthru
      _
    // Predicated region
    $region14: #{tpu_custom_call.1} parent=1 // pred_check
      _
    $region15: #{tpu_custom_call.1} parent=1 // pred_check_branch
      %50 = sbr.rel (0) target = $region17
    $region16: #{tpu_custom_call.1} parent=1 // pred_region
      _
    $region17: #{tpu_custom_call.1} parent=1 // pred_fallthru
      _
    // Predicated region
    $region18: #{tpu_custom_call.1} parent=1 // pred_check
      _
    $region19: #{tpu_custom_call.1} parent=1 // pred_check_branch
      %52 = sbr.rel (0) target = $region21
    $region20: #{tpu_custom_call.1} parent=1 // pred_region
      _
    $region21: #{tpu_custom_call.1} parent=1 // pred_fallthru
      _
    // Predicated region
    $region22: #{tpu_custom_call.1} parent=1 // pred_check
      _
    $region23: #{tpu_custom_call.1} parent=1 // pred_check_branch
      %54 = sbr.rel (0) target = $region25
    $region24: #{tpu_custom_call.1} parent=1 // pred_region
      %55 = dma.done [#allocation5], 1024
    $region25: #{tpu_custom_call.1} parent=1 // pred_fallthru
      _
    // Predicated region
    $region26: #{tpu_custom_call.1} parent=1 // pred_check
      _
    $region27: #{tpu_custom_call.1} parent=1 // pred_check_branch
      %57 = sbr.rel (0) target = $region29
    $region28: #{tpu_custom_call.1} parent=1 // pred_region
      %58 = dma.done [#allocation8], 3072
    $region29: #{tpu_custom_call.1} parent=1 // pred_fallthru
      _
    // Predicated region
    $region30: #{tpu_custom_call.1} parent=1 // pred_check
      _
    $region31: #{tpu_custom_call.1} parent=1 // pred_check_branch
      %60 = sbr.rel (0) target = $region33
    $region32: #{tpu_custom_call.1} parent=1 // pred_region
      %61 = dma.done [#allocation8], 3072
    $region33: #{tpu_custom_call.1} parent=1 // pred_fallthru
      _
    %p63 = scmp.eq.s32.totalorder 0, 0
    // Predicated region
    $region34: #{tpu_custom_call.1} parent=1 // pred_check
      %p64 = pneg %p63
    $region35: #{tpu_custom_call.1} parent=1 // pred_check_branch
      %66 = sbr.rel (%p64) target = $region37
    $region36: #{tpu_custom_call.1} parent=1 // pred_region
      %67 = vst [vmem:[#allocation2] sm:$0xff] 0.0
      %68 = vst [vmem:[#allocation2 + $0x8] sm:$0xff] 0.0
    $region37: #{tpu_custom_call.1} parent=1 // pred_fallthru
      _
    %v69 = vld [vmem:[#allocation4] sm:$0xf]
    %v70 = vld [vmem:[#allocation4 + $0x4] sm:$0xf]
    %v71 = vld [vmem:[#allocation4 + $0x8] sm:$0xf]
    %v72 = vld [vmem:[#allocation4 + $0xc] sm:$0xf]
    %v73 = vld [vmem:[#allocation4 + $0x10] sm:$0xf]
    %v74 = vld [vmem:[#allocation4 + $0x14] sm:$0xf]
    %v75 = vld [vmem:[#allocation4 + $0x18] sm:$0xf]
    %v76 = vld [vmem:[#allocation4 + $0x1c] sm:$0xf]
    %v77 = vld [vmem:[#allocation4 + $0x20] sm:$0xf]
    %v78 = vld [vmem:[#allocation4 + $0x24] sm:$0xf]
    %v79 = vld [vmem:[#allocation4 + $0x28] sm:$0xf]
    %v80 = vld [vmem:[#allocation4 + $0x2c] sm:$0xf]
    %v81 = vld [vmem:[#allocation4 + $0x30] sm:$0xf]
    %v82 = vld [vmem:[#allocation4 + $0x34] sm:$0xf]
    %v83 = vld [vmem:[#allocation4 + $0x38] sm:$0xf]
    %v84 = vld [vmem:[#allocation4 + $0x3c] sm:$0xf]
    %v85 = vld [vmem:[#allocation7] sm:$0xff]
    %v86 = vld [vmem:[#allocation7 + $0x8] sm:$0xf]
    %v87 = vld [vmem:[#allocation7 + $0xc] sm:$0xff]
    %v88 = vld [vmem:[#allocation7 + $0x14] sm:$0xf]
    %v89 = vld [vmem:[#allocation7 + $0x18] sm:$0xff]
    %v90 = vld [vmem:[#allocation7 + $0x20] sm:$0xf]
    %v91 = vld [vmem:[#allocation7 + $0x24] sm:$0xff]
    %v92 = vld [vmem:[#allocation7 + $0x2c] sm:$0xf]
    %v93 = vld [vmem:[#allocation7 + $0x30] sm:$0xff]
    %v94 = vld [vmem:[#allocation7 + $0x38] sm:$0xf]
    %v95 = vld [vmem:[#allocation7 + $0x3c] sm:$0xff]
    %v96 = vld [vmem:[#allocation7 + $0x44] sm:$0xf]
    %v97 = vld [vmem:[#allocation7 + $0x48] sm:$0xff]
    %v98 = vld [vmem:[#allocation7 + $0x50] sm:$0xf]
    %v99 = vld [vmem:[#allocation7 + $0x54] sm:$0xff]
    %v100 = vld [vmem:[#allocation7 + $0x5c] sm:$0xf]
    %v101 = vld [vmem:[#allocation7 + $0x60] sm:$0xff]
    %v102 = vld [vmem:[#allocation7 + $0x68] sm:$0xf]
    %v103 = vld [vmem:[#allocation7 + $0x6c] sm:$0xff]
    %v104 = vld [vmem:[#allocation7 + $0x74] sm:$0xf]
    %v105 = vld [vmem:[#allocation7 + $0x78] sm:$0xff]
    %v106 = vld [vmem:[#allocation7 + $0x80] sm:$0xf]
    %v107 = vld [vmem:[#allocation7 + $0x84] sm:$0xff]
    %v108 = vld [vmem:[#allocation7 + $0x8c] sm:$0xf]
    %v109 = vld [vmem:[#allocation7 + $0x90] sm:$0xff]
    %v110 = vld [vmem:[#allocation7 + $0x98] sm:$0xf]
    %v111 = vld [vmem:[#allocation7 + $0x9c] sm:$0xff]
    %v112 = vld [vmem:[#allocation7 + $0xa4] sm:$0xf]
    %v113 = vld [vmem:[#allocation7 + $0xa8] sm:$0xff]
    %v114 = vld [vmem:[#allocation7 + $0xb0] sm:$0xf]
    %v115 = vld [vmem:[#allocation7 + $0xb4] sm:$0xff]
    %v116 = vld [vmem:[#allocation7 + $0xbc] sm:$0xf]
    %v117 = vld [vmem:[%s3] sm:$0x7]
    %v119 = vlaneseq
    %v120 = vshrl.u32 %v119, 7
    %v121 = vsub.s32 0, %v120
    %v122 = vrot.slane %v117, %v121
    %v123 = vlaneseq
    %v124 = vshrl.u32 %v123, 7
    %v125 = vsub.s32 1, %v124
    %v126 = vrot.slane %v117, %v125
    %v127 = vlaneseq
    %v128 = vshrl.u32 %v127, 7
    %v129 = vsub.s32 2, %v128
    %v130 = vrot.slane %v117, %v129
    %v150 = vunpack.c.l.b16 %v69
    %v151 = vunpack.c.l.b16 %v70
    %v152 = vunpack.c.l.b16 %v71
    %v153 = vunpack.c.l.b16 %v72
    %v154 = vunpack.c.l.b16 %v73
    %v155 = vunpack.c.l.b16 %v74
    %v156 = vunpack.c.l.b16 %v75
    %v157 = vunpack.c.l.b16 %v76
    %v158 = vunpack.c.l.b16 %v77
    %v159 = vunpack.c.l.b16 %v78
    %v160 = vunpack.c.l.b16 %v79
    %v161 = vunpack.c.l.b16 %v80
    %v162 = vunpack.c.l.b16 %v81
    %v163 = vunpack.c.l.b16 %v82
    %v164 = vunpack.c.l.b16 %v83
    %v165 = vunpack.c.l.b16 %v84
    %v166 = vpack.c.b16 %v151, %v150
    %v167 = vpack.c.b16 %v153, %v152
    %v168 = vpack.c.b16 %v155, %v154
    %v169 = vpack.c.b16 %v157, %v156
    %v170 = vpack.c.b16 %v159, %v158
    %v171 = vpack.c.b16 %v161, %v160
    %v172 = vpack.c.b16 %v163, %v162
    %v173 = vpack.c.b16 %v165, %v164
    %v214 = vunpack.c.l.b16 %v85
    %v215 = vunpack.c.h.b16 %v85
    %v216 = vunpack.c.l.b16 %v86
    %v217 = vunpack.c.l.b16 %v87
    %v218 = vunpack.c.h.b16 %v87
    %v219 = vunpack.c.l.b16 %v88
    %v220 = vunpack.c.l.b16 %v89
    %v221 = vunpack.c.h.b16 %v89
    %v222 = vunpack.c.l.b16 %v90
    %v223 = vunpack.c.l.b16 %v91
    %v224 = vunpack.c.h.b16 %v91
    %v225 = vunpack.c.l.b16 %v92
    %v226 = vunpack.c.l.b16 %v93
    %v227 = vunpack.c.h.b16 %v93
    %v228 = vunpack.c.l.b16 %v94
    %v229 = vunpack.c.l.b16 %v95
    %v230 = vunpack.c.h.b16 %v95
    %v231 = vunpack.c.l.b16 %v96
    %v232 = vunpack.c.l.b16 %v97
    %v233 = vunpack.c.h.b16 %v97
    %v234 = vunpack.c.l.b16 %v98
    %v235 = vunpack.c.l.b16 %v99
    %v236 = vunpack.c.h.b16 %v99
    %v237 = vunpack.c.l.b16 %v100
    %v238 = vunpack.c.l.b16 %v101
    %v239 = vunpack.c.h.b16 %v101
    %v240 = vunpack.c.l.b16 %v102
    %v241 = vunpack.c.l.b16 %v103
    %v242 = vunpack.c.h.b16 %v103
    %v243 = vunpack.c.l.b16 %v104
    %v244 = vunpack.c.l.b16 %v105
    %v245 = vunpack.c.h.b16 %v105
    %v246 = vunpack.c.l.b16 %v106
    %v247 = vunpack.c.l.b16 %v107
    %v248 = vunpack.c.h.b16 %v107
    %v249 = vunpack.c.l.b16 %v108
    %v250 = vunpack.c.l.b16 %v109
    %v251 = vunpack.c.h.b16 %v109
    %v252 = vunpack.c.l.b16 %v110
    %v253 = vunpack.c.l.b16 %v111
    %v254 = vunpack.c.h.b16 %v111
    %v255 = vunpack.c.l.b16 %v112
    %v256 = vunpack.c.l.b16 %v113
    %v257 = vunpack.c.h.b16 %v113
    %v258 = vunpack.c.l.b16 %v114
    %v259 = vunpack.c.l.b16 %v115
    %v260 = vunpack.c.h.b16 %v115
    %v261 = vunpack.c.l.b16 %v116
    %v262 = vpack.c.b16 %v217, %v214
    %v263 = vpack.c.b16 %v218, %v215
    %v264 = vpack.c.b16 %v219, %v216
    %v265 = vpack.c.b16 %v223, %v220
    %v266 = vpack.c.b16 %v224, %v221
    %v267 = vpack.c.b16 %v225, %v222
    %v268 = vpack.c.b16 %v229, %v226
    %v269 = vpack.c.b16 %v230, %v227
    %v270 = vpack.c.b16 %v231, %v228
    %v271 = vpack.c.b16 %v235, %v232
    %v272 = vpack.c.b16 %v236, %v233
    %v273 = vpack.c.b16 %v237, %v234
    %v274 = vpack.c.b16 %v241, %v238
    %v275 = vpack.c.b16 %v242, %v239
    %v276 = vpack.c.b16 %v243, %v240
    %v277 = vpack.c.b16 %v247, %v244
    %v278 = vpack.c.b16 %v248, %v245
    %v279 = vpack.c.b16 %v249, %v246
    %v280 = vpack.c.b16 %v253, %v250
    %v281 = vpack.c.b16 %v254, %v251
    %v282 = vpack.c.b16 %v255, %v252
    %v283 = vpack.c.b16 %v259, %v256
    %v284 = vpack.c.b16 %v260, %v257
    %v285 = vpack.c.b16 %v261, %v258
    %310 = vmatprep.subr.bf16.mxu0 %v284
    %311 = vmatpush1.bf16.msra.mxu0 %v283
    %312 = vmatprep.subr.bf16.mxu0 %v281
    %313 = vmatpush1.bf16.msra.mxu0 %v280
    %314 = vmatprep.subr.bf16.mxu0 %v278
    %315 = vmatpush1.bf16.msra.mxu0 %v277
    %316 = vmatprep.subr.bf16.mxu0 %v275
    %317 = vmatpush1.bf16.msra.mxu0 %v274
    %318 = vmatprep.subr.bf16.mxu0 %v272
    %319 = vmatpush1.bf16.msra.mxu0 %v271
    %320 = vmatprep.subr.bf16.mxu0 %v269
    %321 = vmatpush1.bf16.msra.mxu0 %v268
    %322 = vmatprep.subr.bf16.mxu0 %v266
    %323 = vmatpush1.bf16.msra.mxu0 %v265
    %324 = vmatprep.subr.bf16.mxu0 %v263
    %325 = vmatpush1.bf16.msra.mxu0 %v262
    %326 = vmatprep.subr.bf16.mxu0 0
    %327 = vmatpush2.bf16.msra.mxu0 0
    %328 = vmatprep.subr.bf16.mxu0 0
    %329 = vmatpush2.bf16.msra.mxu0 0
    %330 = vmatprep.subr.bf16.mxu0 0
    %331 = vmatpush2.bf16.msra.mxu0 0
    %332 = vmatprep.subr.bf16.mxu0 0
    %333 = vmatpush2.bf16.msra.mxu0 0
    %334 = vmatprep.subr.bf16.mxu0 0
    %335 = vmatpush2.bf16.msra.mxu0 0
    %336 = vmatprep.subr.bf16.mxu0 0
    %337 = vmatpush2.bf16.msra.mxu0 0
    %338 = vmatprep.subr.bf16.mxu0 0
    %339 = vmatpush2.bf16.msra.mxu0 0
    %340 = vmatprep.subr.bf16.mxu0 0
    %341 = vmatpush2.bf16.msra.mxu0 0
    %342 = vmatprep.mubr.bf16.mxu0 0
    %343 = vmatmul.mubr.bf16.gmra.mxu0 %v166
    %v344 = vpop.f32.mrf.mxu0
    %v345 = vadd.f32 %v122, %v344
    %v346 = vpop.f32.mrf.mxu0
    %v347 = vadd.f32 %v126, %v346
    %v348 = vpop.f32.mrf.mxu0
    %v349 = vadd.f32 %v122, %v348
    %v350 = vpop.f32.mrf.mxu0
    %v351 = vadd.f32 %v126, %v350
    %352 = vmatprep.mubr.bf16.mxu0 0
    %353 = vmatmul.mubr.bf16.gmra.mxu0 %v167
    %v354 = vpop.f32.mrf.mxu0
    %v355 = vadd.f32 %v122, %v354
    %v356 = vpop.f32.mrf.mxu0
    %v357 = vadd.f32 %v126, %v356
    %v358 = vpop.f32.mrf.mxu0
    %v359 = vadd.f32 %v122, %v358
    %v360 = vpop.f32.mrf.mxu0
    %v361 = vadd.f32 %v126, %v360
    %362 = vmatprep.mubr.bf16.mxu0 0
    %363 = vmatmul.mubr.bf16.gmra.mxu0 %v168
    %v364 = vpop.f32.mrf.mxu0
    %v365 = vadd.f32 %v122, %v364
    %v366 = vpop.f32.mrf.mxu0
    %v367 = vadd.f32 %v126, %v366
    %v368 = vpop.f32.mrf.mxu0
    %v369 = vadd.f32 %v122, %v368
    %v370 = vpop.f32.mrf.mxu0
    %v371 = vadd.f32 %v126, %v370
    %372 = vmatprep.mubr.bf16.mxu0 0
    %373 = vmatmul.mubr.bf16.gmra.mxu0 %v169
    %v374 = vpop.f32.mrf.mxu0
    %v375 = vadd.f32 %v122, %v374
    %v376 = vpop.f32.mrf.mxu0
    %v377 = vadd.f32 %v126, %v376
    %v378 = vpop.f32.mrf.mxu0
    %v379 = vadd.f32 %v122, %v378
    %v380 = vpop.f32.mrf.mxu0
    %v381 = vadd.f32 %v126, %v380
    %382 = vmatprep.mubr.bf16.mxu0 0
    %383 = vmatmul.mubr.bf16.gmra.mxu0 %v170
    %v384 = vpop.f32.mrf.mxu0
    %v385 = vadd.f32 %v122, %v384
    %v386 = vpop.f32.mrf.mxu0
    %v387 = vadd.f32 %v126, %v386
    %v388 = vpop.f32.mrf.mxu0
    %v389 = vadd.f32 %v122, %v388
    %v390 = vpop.f32.mrf.mxu0
    %v391 = vadd.f32 %v126, %v390
    %392 = vmatprep.mubr.bf16.mxu0 0
    %393 = vmatmul.mubr.bf16.gmra.mxu0 %v171
    %v394 = vpop.f32.mrf.mxu0
    %v395 = vadd.f32 %v122, %v394
    %v396 = vpop.f32.mrf.mxu0
    %v397 = vadd.f32 %v126, %v396
    %v398 = vpop.f32.mrf.mxu0
    %v399 = vadd.f32 %v122, %v398
    %v400 = vpop.f32.mrf.mxu0
    %v401 = vadd.f32 %v126, %v400
    %402 = vmatprep.mubr.bf16.mxu0 0
    %403 = vmatmul.mubr.bf16.gmra.mxu0 %v172
    %v404 = vpop.f32.mrf.mxu0
    %v405 = vadd.f32 %v122, %v404
    %v406 = vpop.f32.mrf.mxu0
    %v407 = vadd.f32 %v126, %v406
    %v408 = vpop.f32.mrf.mxu0
    %v409 = vadd.f32 %v122, %v408
    %v410 = vpop.f32.mrf.mxu0
    %v411 = vadd.f32 %v126, %v410
    %412 = vmatprep.mubr.bf16.mxu0 0
    %413 = vmatmul.mubr.bf16.gmra.mxu0 %v173
    %v414 = vpop.f32.mrf.mxu0
    %v415 = vadd.f32 %v122, %v414
    %v416 = vpop.f32.mrf.mxu0
    %v417 = vadd.f32 %v126, %v416
    %v418 = vpop.f32.mrf.mxu0
    %v419 = vadd.f32 %v122, %v418
    %v420 = vpop.f32.mrf.mxu0
    %v421 = vadd.f32 %v126, %v420
    %422 = vdwg.mxu0
    %423 = vmatprep.subr.bf16.mxu0 0
    %424 = vmatpush1.bf16.msra.mxu0 %v285
    %425 = vmatprep.subr.bf16.mxu0 0
    %426 = vmatpush1.bf16.msra.mxu0 %v282
    %427 = vmatprep.subr.bf16.mxu0 0
    %428 = vmatpush1.bf16.msra.mxu0 %v279
    %429 = vmatprep.subr.bf16.mxu0 0
    %430 = vmatpush1.bf16.msra.mxu0 %v276
    %431 = vmatprep.subr.bf16.mxu0 0
    %432 = vmatpush1.bf16.msra.mxu0 %v273
    %433 = vmatprep.subr.bf16.mxu0 0
    %434 = vmatpush1.bf16.msra.mxu0 %v270
    %435 = vmatprep.subr.bf16.mxu0 0
    %436 = vmatpush1.bf16.msra.mxu0 %v267
    %437 = vmatprep.subr.bf16.mxu0 0
    %438 = vmatpush1.bf16.msra.mxu0 %v264
    %439 = vmatprep.subr.bf16.mxu0 0
    %440 = vmatpush2.bf16.msra.mxu0 0
    %441 = vmatprep.subr.bf16.mxu0 0
    %442 = vmatpush2.bf16.msra.mxu0 0
    %443 = vmatprep.subr.bf16.mxu0 0
    %444 = vmatpush2.bf16.msra.mxu0 0
    %445 = vmatprep.subr.bf16.mxu0 0
    %446 = vmatpush2.bf16.msra.mxu0 0
    %447 = vmatprep.subr.bf16.mxu0 0
    %448 = vmatpush2.bf16.msra.mxu0 0
    %449 = vmatprep.subr.bf16.mxu0 0
    %450 = vmatpush2.bf16.msra.mxu0 0
    %451 = vmatprep.subr.bf16.mxu0 0
    %452 = vmatpush2.bf16.msra.mxu0 0
    %453 = vmatprep.subr.bf16.mxu0 0
    %454 = vmatpush2.bf16.msra.mxu0 0
    %455 = vmatprep.mubr.bf16.mxu0 0
    %456 = vmatmul.mubr.bf16.gmra.mxu0 %v166
    %v457 = vpop.f32.mrf.mxu0
    %v458 = vadd.f32 %v130, %v457
    %v459 = vpop.f32.mrf.mxu0
    %v460 = vpop.f32.mrf.mxu0
    %v461 = vadd.f32 %v130, %v460
    %v462 = vpop.f32.mrf.mxu0
    %463 = vmatprep.mubr.bf16.mxu0 0
    %464 = vmatmul.mubr.bf16.gmra.mxu0 %v167
    %v465 = vpop.f32.mrf.mxu0
    %v466 = vadd.f32 %v130, %v465
    %v467 = vpop.f32.mrf.mxu0
    %v468 = vpop.f32.mrf.mxu0
    %v469 = vadd.f32 %v130, %v468
    %v470 = vpop.f32.mrf.mxu0
    %471 = vmatprep.mubr.bf16.mxu0 0
    %472 = vmatmul.mubr.bf16.gmra.mxu0 %v168
    %v473 = vpop.f32.mrf.mxu0
    %v474 = vadd.f32 %v130, %v473
    %v475 = vpop.f32.mrf.mxu0
    %v476 = vpop.f32.mrf.mxu0
    %v477 = vadd.f32 %v130, %v476
    %v478 = vpop.f32.mrf.mxu0
    %479 = vmatprep.mubr.bf16.mxu0 0
    %480 = vmatmul.mubr.bf16.gmra.mxu0 %v169
    %v481 = vpop.f32.mrf.mxu0
    %v482 = vadd.f32 %v130, %v481
    %v483 = vpop.f32.mrf.mxu0
    %v484 = vpop.f32.mrf.mxu0
    %v485 = vadd.f32 %v130, %v484
    %v486 = vpop.f32.mrf.mxu0
    %487 = vmatprep.mubr.bf16.mxu0 0
    %488 = vmatmul.mubr.bf16.gmra.mxu0 %v170
    %v489 = vpop.f32.mrf.mxu0
    %v490 = vadd.f32 %v130, %v489
    %v491 = vpop.f32.mrf.mxu0
    %v492 = vpop.f32.mrf.mxu0
    %v493 = vadd.f32 %v130, %v492
    %v494 = vpop.f32.mrf.mxu0
    %495 = vmatprep.mubr.bf16.mxu0 0
    %496 = vmatmul.mubr.bf16.gmra.mxu0 %v171
    %v497 = vpop.f32.mrf.mxu0
    %v498 = vadd.f32 %v130, %v497
    %v499 = vpop.f32.mrf.mxu0
    %v500 = vpop.f32.mrf.mxu0
    %v501 = vadd.f32 %v130, %v500
    %v502 = vpop.f32.mrf.mxu0
    %503 = vmatprep.mubr.bf16.mxu0 0
    %504 = vmatmul.mubr.bf16.gmra.mxu0 %v172
    %v505 = vpop.f32.mrf.mxu0
    %v506 = vadd.f32 %v130, %v505
    %v507 = vpop.f32.mrf.mxu0
    %v508 = vpop.f32.mrf.mxu0
    %v509 = vadd.f32 %v130, %v508
    %v510 = vpop.f32.mrf.mxu0
    %511 = vmatprep.mubr.bf16.mxu0 0
    %512 = vmatmul.mubr.bf16.gmra.mxu0 %v173
    %v513 = vpop.f32.mrf.mxu0
    %v514 = vadd.f32 %v130, %v513
    %v515 = vpop.f32.mrf.mxu0
    %v516 = vpop.f32.mrf.mxu0
    %v517 = vadd.f32 %v130, %v516
    %v518 = vpop.f32.mrf.mxu0
    %519 = vdwg.mxu0
    %520 = vst [vmem:[#allocation3] sm:$0xff] %v345
    %521 = vst [vmem:[#allocation3 + $0x8] sm:$0xff] %v347
    %522 = vst [vmem:[#allocation3 + $0x10] sm:$0xff] %v458
    %523 = vst [vmem:[#allocation3 + $0x18] sm:$0xff] %v349
    %524 = vst [vmem:[#allocation3 + $0x20] sm:$0xff] %v351
    %525 = vst [vmem:[#allocation3 + $0x28] sm:$0xff] %v461
    %526 = vst [vmem:[#allocation3 + $0x30] sm:$0xff] %v355
    %527 = vst [vmem:[#allocation3 + $0x38] sm:$0xff] %v357
    %528 = vst [vmem:[#allocation3 + $0x40] sm:$0xff] %v466
    %529 = vst [vmem:[#allocation3 + $0x48] sm:$0xff] %v359
    %530 = vst [vmem:[#allocation3 + $0x50] sm:$0xff] %v361
    %531 = vst [vmem:[#allocation3 + $0x58] sm:$0xff] %v469
    %532 = vst [vmem:[#allocation3 + $0x60] sm:$0xff] %v365
    %533 = vst [vmem:[#allocation3 + $0x68] sm:$0xff] %v367
    %534 = vst [vmem:[#allocation3 + $0x70] sm:$0xff] %v474
    %535 = vst [vmem:[#allocation3 + $0x78] sm:$0xff] %v369
    %536 = vst [vmem:[#allocation3 + $0x80] sm:$0xff] %v371
    %537 = vst [vmem:[#allocation3 + $0x88] sm:$0xff] %v477
    %538 = vst [vmem:[#allocation3 + $0x90] sm:$0xff] %v375
    %539 = vst [vmem:[#allocation3 + $0x98] sm:$0xff] %v377
    %540 = vst [vmem:[#allocation3 + $0xa0] sm:$0xff] %v482
    %541 = vst [vmem:[#allocation3 + $0xa8] sm:$0xff] %v379
    %542 = vst [vmem:[#allocation3 + $0xb0] sm:$0xff] %v381
    %543 = vst [vmem:[#allocation3 + $0xb8] sm:$0xff] %v485
    %544 = vst [vmem:[#allocation3 + $0xc0] sm:$0xff] %v385
    %545 = vst [vmem:[#allocation3 + $0xc8] sm:$0xff] %v387
    %546 = vst [vmem:[#allocation3 + $0xd0] sm:$0xff] %v490
    %547 = vst [vmem:[#allocation3 + $0xd8] sm:$0xff] %v389
    %548 = vst [vmem:[#allocation3 + $0xe0] sm:$0xff] %v391
    %549 = vst [vmem:[#allocation3 + $0xe8] sm:$0xff] %v493
    %550 = vst [vmem:[#allocation3 + $0xf0] sm:$0xff] %v395
    %551 = vst [vmem:[#allocation3 + $0xf8] sm:$0xff] %v397
    %552 = vst [vmem:[#allocation3 + $0x100] sm:$0xff] %v498
    %553 = vst [vmem:[#allocation3 + $0x108] sm:$0xff] %v399
    %554 = vst [vmem:[#allocation3 + $0x110] sm:$0xff] %v401
    %555 = vst [vmem:[#allocation3 + $0x118] sm:$0xff] %v501
    %556 = vst [vmem:[#allocation3 + $0x120] sm:$0xff] %v405
    %557 = vst [vmem:[#allocation3 + $0x128] sm:$0xff] %v407
    %558 = vst [vmem:[#allocation3 + $0x130] sm:$0xff] %v506
    %559 = vst [vmem:[#allocation3 + $0x138] sm:$0xff] %v409
    %560 = vst [vmem:[#allocation3 + $0x140] sm:$0xff] %v411
    %561 = vst [vmem:[#allocation3 + $0x148] sm:$0xff] %v509
    %562 = vst [vmem:[#allocation3 + $0x150] sm:$0xff] %v415
    %563 = vst [vmem:[#allocation3 + $0x158] sm:$0xff] %v417
    %564 = vst [vmem:[#allocation3 + $0x160] sm:$0xff] %v514
    %565 = vst [vmem:[#allocation3 + $0x168] sm:$0xff] %v419
    %566 = vst [vmem:[#allocation3 + $0x170] sm:$0xff] %v421
    %567 = vst [vmem:[#allocation3 + $0x178] sm:$0xff] %v517
    %v568 = vld [vmem:[#allocation9] sm:$0xff]
    %v569 = vld [vmem:[#allocation9 + $0x8] sm:$0xf]
    %v570 = vld [vmem:[#allocation9 + $0xc] sm:$0xff]
    %v571 = vld [vmem:[#allocation9 + $0x14] sm:$0xf]
    %v572 = vld [vmem:[#allocation9 + $0x18] sm:$0xff]
    %v573 = vld [vmem:[#allocation9 + $0x20] sm:$0xf]
    %v574 = vld [vmem:[#allocation9 + $0x24] sm:$0xff]
    %v575 = vld [vmem:[#allocation9 + $0x2c] sm:$0xf]
    %v576 = vld [vmem:[#allocation9 + $0x30] sm:$0xff]
    %v577 = vld [vmem:[#allocation9 + $0x38] sm:$0xf]
    %v578 = vld [vmem:[#allocation9 + $0x3c] sm:$0xff]
    %v579 = vld [vmem:[#allocation9 + $0x44] sm:$0xf]
    %v580 = vld [vmem:[#allocation9 + $0x48] sm:$0xff]
    %v581 = vld [vmem:[#allocation9 + $0x50] sm:$0xf]
    %v582 = vld [vmem:[#allocation9 + $0x54] sm:$0xff]
    %v583 = vld [vmem:[#allocation9 + $0x5c] sm:$0xf]
    %v584 = vld [vmem:[#allocation9 + $0x60] sm:$0xff]
    %v585 = vld [vmem:[#allocation9 + $0x68] sm:$0xf]
    %v586 = vld [vmem:[#allocation9 + $0x6c] sm:$0xff]
    %v587 = vld [vmem:[#allocation9 + $0x74] sm:$0xf]
    %v588 = vld [vmem:[#allocation9 + $0x78] sm:$0xff]
    %v589 = vld [vmem:[#allocation9 + $0x80] sm:$0xf]
    %v590 = vld [vmem:[#allocation9 + $0x84] sm:$0xff]
    %v591 = vld [vmem:[#allocation9 + $0x8c] sm:$0xf]
    %v592 = vld [vmem:[#allocation9 + $0x90] sm:$0xff]
    %v593 = vld [vmem:[#allocation9 + $0x98] sm:$0xf]
    %v594 = vld [vmem:[#allocation9 + $0x9c] sm:$0xff]
    %v595 = vld [vmem:[#allocation9 + $0xa4] sm:$0xf]
    %v596 = vld [vmem:[#allocation9 + $0xa8] sm:$0xff]
    %v597 = vld [vmem:[#allocation9 + $0xb0] sm:$0xf]
    %v598 = vld [vmem:[#allocation9 + $0xb4] sm:$0xff]
    %v599 = vld [vmem:[#allocation9 + $0xbc] sm:$0xf]
    %v600 = vld [vmem:[%s4] sm:$0x1]
    %v602 = vlaneseq
    %v603 = vshrl.u32 %v602, 7
    %v604 = vsub.s32 0, %v603
    %v605 = vrot.slane %v600, %v604
    %v607 = vld [vmem:[#allocation2] sm:$0xff]
    %v608 = vld [vmem:[#allocation2 + $0x8] sm:$0xff]
    %v609 = vld [vmem:[#allocation3] sm:$0xff]
    %v610 = vld [vmem:[#allocation3 + $0x8] sm:$0xff]
    %v611 = vld [vmem:[#allocation3 + $0x10] sm:$0xff]
    %v612 = vld [vmem:[#allocation3 + $0x18] sm:$0xff]
    %v613 = vld [vmem:[#allocation3 + $0x20] sm:$0xff]
    %v614 = vld [vmem:[#allocation3 + $0x28] sm:$0xff]
    %v615 = vpack.c.bf16 %v608, %v607
    %v648 = vunpack.c.l.b16 %v568
    %v649 = vunpack.c.h.b16 %v568
    %v650 = vunpack.c.l.b16 %v569
    %v651 = vunpack.c.l.b16 %v570
    %v652 = vunpack.c.h.b16 %v570
    %v653 = vunpack.c.l.b16 %v571
    %v654 = vunpack.c.l.b16 %v572
    %v655 = vunpack.c.h.b16 %v572
    %v656 = vunpack.c.l.b16 %v573
    %v657 = vunpack.c.l.b16 %v574
    %v658 = vunpack.c.h.b16 %v574
    %v659 = vunpack.c.l.b16 %v575
    %v660 = vunpack.c.l.b16 %v576
    %v661 = vunpack.c.h.b16 %v576
    %v662 = vunpack.c.l.b16 %v577
    %v663 = vunpack.c.l.b16 %v578
    %v664 = vunpack.c.h.b16 %v578
    %v665 = vunpack.c.l.b16 %v579
    %v666 = vunpack.c.l.b16 %v580
    %v667 = vunpack.c.h.b16 %v580
    %v668 = vunpack.c.l.b16 %v581
    %v669 = vunpack.c.l.b16 %v582
    %v670 = vunpack.c.h.b16 %v582
    %v671 = vunpack.c.l.b16 %v583
    %v672 = vunpack.c.l.b16 %v584
    %v673 = vunpack.c.h.b16 %v584
    %v674 = vunpack.c.l.b16 %v585
    %v675 = vunpack.c.l.b16 %v586
    %v676 = vunpack.c.h.b16 %v586
    %v677 = vunpack.c.l.b16 %v587
    %v678 = vunpack.c.l.b16 %v588
    %v679 = vunpack.c.h.b16 %v588
    %v680 = vunpack.c.l.b16 %v589
    %v681 = vunpack.c.l.b16 %v590
    %v682 = vunpack.c.h.b16 %v590
    %v683 = vunpack.c.l.b16 %v591
    %v684 = vunpack.c.l.b16 %v592
    %v685 = vunpack.c.h.b16 %v592
    %v686 = vunpack.c.l.b16 %v593
    %v687 = vunpack.c.l.b16 %v594
    %v688 = vunpack.c.h.b16 %v594
    %v689 = vunpack.c.l.b16 %v595
    %v690 = vunpack.c.l.b16 %v596
    %v691 = vunpack.c.h.b16 %v596
    %v692 = vunpack.c.l.b16 %v597
    %v693 = vunpack.c.l.b16 %v598
    %v694 = vunpack.c.h.b16 %v598
    %v695 = vunpack.c.l.b16 %v599
    %v696 = vpack.c.b16 %v651, %v648
    %v697 = vpack.c.b16 %v652, %v649
    %v698 = vpack.c.b16 %v653, %v650
    %v699 = vpack.c.b16 %v657, %v654
    %v700 = vpack.c.b16 %v658, %v655
    %v701 = vpack.c.b16 %v659, %v656
    %v702 = vpack.c.b16 %v663, %v660
    %v703 = vpack.c.b16 %v664, %v661
    %v704 = vpack.c.b16 %v665, %v662
    %v705 = vpack.c.b16 %v669, %v666
    %v706 = vpack.c.b16 %v670, %v667
    %v707 = vpack.c.b16 %v671, %v668
    %v708 = vpack.c.b16 %v675, %v672
    %v709 = vpack.c.b16 %v676, %v673
    %v710 = vpack.c.b16 %v677, %v674
    %v711 = vpack.c.b16 %v681, %v678
    %v712 = vpack.c.b16 %v682, %v679
    %v713 = vpack.c.b16 %v683, %v680
    %v714 = vpack.c.b16 %v687, %v684
    %v715 = vpack.c.b16 %v688, %v685
    %v716 = vpack.c.b16 %v689, %v686
    %v717 = vpack.c.b16 %v693, %v690
    %v718 = vpack.c.b16 %v694, %v691
    %v719 = vpack.c.b16 %v695, %v692
    %744 = vmatprep.subr.bf16.mxu0 %v718
    %745 = vmatpush1.bf16.msra.mxu0 %v717
    %746 = vmatprep.subr.bf16.mxu0 %v715
    %747 = vmatpush1.bf16.msra.mxu0 %v714
    %748 = vmatprep.subr.bf16.mxu0 %v712
    %749 = vmatpush1.bf16.msra.mxu0 %v711
    %750 = vmatprep.subr.bf16.mxu0 %v709
    %751 = vmatpush1.bf16.msra.mxu0 %v708
    %752 = vmatprep.subr.bf16.mxu0 %v706
    %753 = vmatpush1.bf16.msra.mxu0 %v705
    %754 = vmatprep.subr.bf16.mxu0 %v703
    %755 = vmatpush1.bf16.msra.mxu0 %v702
    %756 = vmatprep.subr.bf16.mxu0 %v700
    %757 = vmatpush1.bf16.msra.mxu0 %v699
    %758 = vmatprep.subr.bf16.mxu0 %v697
    %759 = vmatpush1.bf16.msra.mxu0 %v696
    %760 = vmatprep.subr.bf16.mxu0 0
    %761 = vmatpush2.bf16.msra.mxu0 0
    %762 = vmatprep.subr.bf16.mxu0 0
    %763 = vmatpush2.bf16.msra.mxu0 0
    %764 = vmatprep.subr.bf16.mxu0 0
    %765 = vmatpush2.bf16.msra.mxu0 0
    %766 = vmatprep.subr.bf16.mxu0 0
    %767 = vmatpush2.bf16.msra.mxu0 0
    %768 = vmatprep.subr.bf16.mxu0 0
    %769 = vmatpush2.bf16.msra.mxu0 0
    %770 = vmatprep.subr.bf16.mxu0 0
    %771 = vmatpush2.bf16.msra.mxu0 0
    %772 = vmatprep.subr.bf16.mxu0 0
    %773 = vmatpush2.bf16.msra.mxu0 0
    %774 = vmatprep.subr.bf16.mxu0 0
    %775 = vmatpush2.bf16.msra.mxu0 0
    %776 = vmatprep.mubr.bf16.mxu0 0
    %777 = vmatmul.mubr.bf16.gmra.mxu0 %v615
    %v778 = vpop.f32.mrf.mxu0
    %v779 = vadd.f32 0.0, %v778
    %v780 = vpop.f32.mrf.mxu0
    %v781 = vadd.f32 0.0, %v780
    %v782 = vpop.f32.mrf.mxu0
    %v783 = vadd.f32 0.0, %v782
    %v784 = vpop.f32.mrf.mxu0
    %v785 = vadd.f32 0.0, %v784
    %786 = vdwg.mxu0
    %787 = vmatprep.subr.bf16.mxu0 0
    %788 = vmatpush1.bf16.msra.mxu0 %v719
    %789 = vmatprep.subr.bf16.mxu0 0
    %790 = vmatpush1.bf16.msra.mxu0 %v716
    %791 = vmatprep.subr.bf16.mxu0 0
    %792 = vmatpush1.bf16.msra.mxu0 %v713
    %793 = vmatprep.subr.bf16.mxu0 0
    %794 = vmatpush1.bf16.msra.mxu0 %v710
    %795 = vmatprep.subr.bf16.mxu0 0
    %796 = vmatpush1.bf16.msra.mxu0 %v707
    %797 = vmatprep.subr.bf16.mxu0 0
    %798 = vmatpush1.bf16.msra.mxu0 %v704
    %799 = vmatprep.subr.bf16.mxu0 0
    %800 = vmatpush1.bf16.msra.mxu0 %v701
    %801 = vmatprep.subr.bf16.mxu0 0
    %802 = vmatpush1.bf16.msra.mxu0 %v698
    %803 = vmatprep.subr.bf16.mxu0 0
    %804 = vmatpush2.bf16.msra.mxu0 0
    %805 = vmatprep.subr.bf16.mxu0 0
    %806 = vmatpush2.bf16.msra.mxu0 0
    %807 = vmatprep.subr.bf16.mxu0 0
    %808 = vmatpush2.bf16.msra.mxu0 0
    %809 = vmatprep.subr.bf16.mxu0 0
    %810 = vmatpush2.bf16.msra.mxu0 0
    %811 = vmatprep.subr.bf16.mxu0 0
    %812 = vmatpush2.bf16.msra.mxu0 0
    %813 = vmatprep.subr.bf16.mxu0 0
    %814 = vmatpush2.bf16.msra.mxu0 0
    %815 = vmatprep.subr.bf16.mxu0 0
    %816 = vmatpush2.bf16.msra.mxu0 0
    %817 = vmatprep.subr.bf16.mxu0 0
    %818 = vmatpush2.bf16.msra.mxu0 0
    %819 = vmatprep.mubr.bf16.mxu0 0
    %820 = vmatmul.mubr.bf16.gmra.mxu0 %v615
    %v821 = vpop.f32.mrf.mxu0
    %v822 = vadd.f32 0.0, %v821
    %v823 = vpop.f32.mrf.mxu0
    %v824 = vpop.f32.mrf.mxu0
    %v825 = vadd.f32 0.0, %v824
    %v826 = vpop.f32.mrf.mxu0
    %827 = vdwg.mxu0
    %v828 = vadd.f32 %v609, %v779
    %v829 = vadd.f32 %v612, %v783
    %v830 = vxor.u32 %v828, 2147483648
    %v831 = vxor.u32 %v829, 2147483648
    %v832 = vmul.f32 %v830, 1.442695
    %v833 = vpow.pop %v832
    %v834 = vmul.f32 %v831, 1.442695
    %v835 = vpow.pop %v834
    %v836 = vadd.f32 %v833, 1.0
    %v837 = vadd.f32 %v835, 1.0
    %v838 = vrcp.pop %v836
    %v839 = vmul.f32 1.0, %v838
    %v840 = vrcp.pop %v837
    %v841 = vmul.f32 1.0, %v840
    %v842 = vadd.f32 %v610, %v781
    %v843 = vadd.f32 %v613, %v785
    %v844 = vxor.u32 %v842, 2147483648
    %v845 = vxor.u32 %v843, 2147483648
    %v846 = vmul.f32 %v844, 1.442695
    %v847 = vpow.pop %v846
    %v848 = vmul.f32 %v845, 1.442695
    %v849 = vpow.pop %v848
    %v850 = vadd.f32 %v847, 1.0
    %v851 = vadd.f32 %v849, 1.0
    %v852 = vrcp.pop %v850
    %v853 = vmul.f32 1.0, %v852
    %v854 = vrcp.pop %v851
    %v855 = vmul.f32 1.0, %v854
    %v856 = vadd.f32 %v822, %v605
    %v857 = vadd.f32 %v825, %v605
    %v858 = vmul.f32 %v839, %v856
    %v859 = vmul.f32 %v841, %v857
    %v860 = vadd.f32 %v611, %v858
    %v861 = vadd.f32 %v614, %v859
    %v862 = vtanh.pop %v860
    %v863 = vtanh.pop %v861
    %v864 = vsub.f32 1.0, %v853
    %v865 = vsub.f32 1.0, %v855
    %v866 = vmul.f32 %v864, %v862
    %v867 = vmul.f32 %v865, %v863
    %v868 = vmul.f32 %v853, %v607
    %v869 = vmul.f32 %v855, %v608
    %v870 = vadd.f32 %v866, %v868
    %v871 = vadd.f32 %v867, %v869
    %v872 = vpack.c.bf16 %v871, %v870
    %v874 = vunpack.c.l.b16 %v872
    %v875 = vunpack.c.h.b16 %v872
    %v876 = vpack.c.b16 %v874, %v874
    %v877 = vpack.c.b16 %v875, %v875
    %880 = vst [vmem:[#allocation10] sm:$0xf] %v876
    %881 = vst [vmem:[#allocation10 + $0x4] sm:$0xf] %v877
    %s882 = scalar_lea.vmem [#allocation3], 48
    %v883 = vld [vmem:[%s882] sm:$0xff]
    %v884 = vld [vmem:[%s882 + $0x8] sm:$0xff]
    %v885 = vld [vmem:[%s882 + $0x10] sm:$0xff]
    %v886 = vld [vmem:[%s882 + $0x18] sm:$0xff]
    %v887 = vld [vmem:[%s882 + $0x20] sm:$0xff]
    %v888 = vld [vmem:[%s882 + $0x28] sm:$0xff]
    %889 = vmatprep.subr.bf16.mxu0 %v718
    %890 = vmatpush1.bf16.msra.mxu0 %v717
    %891 = vmatprep.subr.bf16.mxu0 %v715
    %892 = vmatpush1.bf16.msra.mxu0 %v714
    %893 = vmatprep.subr.bf16.mxu0 %v712
    %894 = vmatpush1.bf16.msra.mxu0 %v711
    %895 = vmatprep.subr.bf16.mxu0 %v709
    %896 = vmatpush1.bf16.msra.mxu0 %v708
    %897 = vmatprep.subr.bf16.mxu0 %v706
    %898 = vmatpush1.bf16.msra.mxu0 %v705
    %899 = vmatprep.subr.bf16.mxu0 %v703
    %900 = vmatpush1.bf16.msra.mxu0 %v702
    %901 = vmatprep.subr.bf16.mxu0 %v700
    %902 = vmatpush1.bf16.msra.mxu0 %v699
    %903 = vmatprep.subr.bf16.mxu0 %v697
    %904 = vmatpush1.bf16.msra.mxu0 %v696
    %905 = vmatprep.subr.bf16.mxu0 0
    %906 = vmatpush2.bf16.msra.mxu0 0
    %907 = vmatprep.subr.bf16.mxu0 0
    %908 = vmatpush2.bf16.msra.mxu0 0
    %909 = vmatprep.subr.bf16.mxu0 0
    %910 = vmatpush2.bf16.msra.mxu0 0
    %911 = vmatprep.subr.bf16.mxu0 0
    %912 = vmatpush2.bf16.msra.mxu0 0
    %913 = vmatprep.subr.bf16.mxu0 0
    %914 = vmatpush2.bf16.msra.mxu0 0
    %915 = vmatprep.subr.bf16.mxu0 0
    %916 = vmatpush2.bf16.msra.mxu0 0
    %917 = vmatprep.subr.bf16.mxu0 0
    %918 = vmatpush2.bf16.msra.mxu0 0
    %919 = vmatprep.subr.bf16.mxu0 0
    %920 = vmatpush2.bf16.msra.mxu0 0
    %921 = vmatprep.mubr.bf16.mxu0 0
    %922 = vmatmul.mubr.bf16.gmra.mxu0 %v872
    %v923 = vpop.f32.mrf.mxu0
    %v924 = vadd.f32 0.0, %v923
    %v925 = vpop.f32.mrf.mxu0
    %v926 = vadd.f32 0.0, %v925
    %v927 = vpop.f32.mrf.mxu0
    %v928 = vadd.f32 0.0, %v927
    %v929 = vpop.f32.mrf.mxu0
    %v930 = vadd.f32 0.0, %v929
    %931 = vdwg.mxu0
    %932 = vmatprep.subr.bf16.mxu0 0
    %933 = vmatpush1.bf16.msra.mxu0 %v719
    %934 = vmatprep.subr.bf16.mxu0 0
    %935 = vmatpush1.bf16.msra.mxu0 %v716
    %936 = vmatprep.subr.bf16.mxu0 0
    %937 = vmatpush1.bf16.msra.mxu0 %v713
    %938 = vmatprep.subr.bf16.mxu0 0
    %939 = vmatpush1.bf16.msra.mxu0 %v710
    %940 = vmatprep.subr.bf16.mxu0 0
    %941 = vmatpush1.bf16.msra.mxu0 %v707
    %942 = vmatprep.subr.bf16.mxu0 0
    %943 = vmatpush1.bf16.msra.mxu0 %v704
    %944 = vmatprep.subr.bf16.mxu0 0
    %945 = vmatpush1.bf16.msra.mxu0 %v701
    %946 = vmatprep.subr.bf16.mxu0 0
    %947 = vmatpush1.bf16.msra.mxu0 %v698
    %948 = vmatprep.subr.bf16.mxu0 0
    %949 = vmatpush2.bf16.msra.mxu0 0
    %950 = vmatprep.subr.bf16.mxu0 0
    %951 = vmatpush2.bf16.msra.mxu0 0
    %952 = vmatprep.subr.bf16.mxu0 0
    %953 = vmatpush2.bf16.msra.mxu0 0
    %954 = vmatprep.subr.bf16.mxu0 0
    %955 = vmatpush2.bf16.msra.mxu0 0
    %956 = vmatprep.subr.bf16.mxu0 0
    %957 = vmatpush2.bf16.msra.mxu0 0
    %958 = vmatprep.subr.bf16.mxu0 0
    %959 = vmatpush2.bf16.msra.mxu0 0
    %960 = vmatprep.subr.bf16.mxu0 0
    %961 = vmatpush2.bf16.msra.mxu0 0
    %962 = vmatprep.subr.bf16.mxu0 0
    %963 = vmatpush2.bf16.msra.mxu0 0
    %964 = vmatprep.mubr.bf16.mxu0 0
    %965 = vmatmul.mubr.bf16.gmra.mxu0 %v872
    %v966 = vpop.f32.mrf.mxu0
    %v967 = vadd.f32 0.0, %v966
    %v968 = vpop.f32.mrf.mxu0
    %v969 = vpop.f32.mrf.mxu0
    %v970 = vadd.f32 0.0, %v969
    %v971 = vpop.f32.mrf.mxu0
    %972 = vdwg.mxu0
    %v973 = vadd.f32 %v883, %v924
    %v974 = vadd.f32 %v886, %v928
    %v975 = vxor.u32 %v973, 2147483648
    %v976 = vxor.u32 %v974, 2147483648
    %v977 = vmul.f32 %v975, 1.442695
    %v978 = vpow.pop %v977
    %v979 = vmul.f32 %v976, 1.442695
    %v980 = vpow.pop %v979
    %v981 = vadd.f32 %v978, 1.0
    %v982 = vadd.f32 %v980, 1.0
    %v983 = vrcp.pop %v981
    %v984 = vmul.f32 1.0, %v983
    %v985 = vrcp.pop %v982
    %v986 = vmul.f32 1.0, %v985
    %v987 = vadd.f32 %v884, %v926
    %v988 = vadd.f32 %v887, %v930
    %v989 = vxor.u32 %v987, 2147483648
    %v990 = vxor.u32 %v988, 2147483648
    %v991 = vmul.f32 %v989, 1.442695
    %v992 = vpow.pop %v991
    %v993 = vmul.f32 %v990, 1.442695
    %v994 = vpow.pop %v993
    %v995 = vadd.f32 %v992, 1.0
    %v996 = vadd.f32 %v994, 1.0
    %v997 = vrcp.pop %v995
    %v998 = vmul.f32 1.0, %v997
    %v999 = vrcp.pop %v996
    %v1000 = vmul.f32 1.0, %v999
    %v1001 = vadd.f32 %v967, %v605
    %v1002 = vadd.f32 %v970, %v605
    %v1003 = vmul.f32 %v984, %v1001
    %v1004 = vmul.f32 %v986, %v1002
    %v1005 = vadd.f32 %v885, %v1003
    %v1006 = vadd.f32 %v888, %v1004
    %v1007 = vtanh.pop %v1005
    %v1008 = vtanh.pop %v1006
    %v1009 = vsub.f32 1.0, %v998
    %v1010 = vsub.f32 1.0, %v1000
    %v1011 = vmul.f32 %v1009, %v1007
    %v1012 = vmul.f32 %v1010, %v1008
    %v1013 = vmul.f32 %v998, %v870
    %v1014 = vmul.f32 %v1000, %v871
    %v1015 = vadd.f32 %v1011, %v1013
    %v1016 = vadd.f32 %v1012, %v1014
    %v1017 = vpack.c.bf16 %v1016, %v1015
    %v1019 = vunpack.c.l.b16 %v1017
    %v1020 = vunpack.c.h.b16 %v1017
    %v1021 = vpack.c.b16 %v1019, %v1019
    %v1022 = vpack.c.b16 %v1020, %v1020
    %s1025 = scalar_lea.vmem [#allocation10], 8
    %1026 = vst [vmem:[%s1025] sm:$0xf] %v1021
    %1027 = vst [vmem:[%s1025 + $0x4] sm:$0xf] %v1022
    %s1028 = scalar_lea.vmem [#allocation3], 96
    %v1029 = vld [vmem:[%s1028] sm:$0xff]
    %v1030 = vld [vmem:[%s1028 + $0x8] sm:$0xff]
    %v1031 = vld [vmem:[%s1028 + $0x10] sm:$0xff]
    %v1032 = vld [vmem:[%s1028 + $0x18] sm:$0xff]
    %v1033 = vld [vmem:[%s1028 + $0x20] sm:$0xff]
    %v1034 = vld [vmem:[%s1028 + $0x28] sm:$0xff]
    %1035 = vmatprep.subr.bf16.mxu0 %v718
    %1036 = vmatpush1.bf16.msra.mxu0 %v717
    %1037 = vmatprep.subr.bf16.mxu0 %v715
    %1038 = vmatpush1.bf16.msra.mxu0 %v714
    %1039 = vmatprep.subr.bf16.mxu0 %v712
    %1040 = vmatpush1.bf16.msra.mxu0 %v711
    %1041 = vmatprep.subr.bf16.mxu0 %v709
    %1042 = vmatpush1.bf16.msra.mxu0 %v708
    %1043 = vmatprep.subr.bf16.mxu0 %v706
    %1044 = vmatpush1.bf16.msra.mxu0 %v705
    %1045 = vmatprep.subr.bf16.mxu0 %v703
    %1046 = vmatpush1.bf16.msra.mxu0 %v702
    %1047 = vmatprep.subr.bf16.mxu0 %v700
    %1048 = vmatpush1.bf16.msra.mxu0 %v699
    %1049 = vmatprep.subr.bf16.mxu0 %v697
    %1050 = vmatpush1.bf16.msra.mxu0 %v696
    %1051 = vmatprep.subr.bf16.mxu0 0
    %1052 = vmatpush2.bf16.msra.mxu0 0
    %1053 = vmatprep.subr.bf16.mxu0 0
    %1054 = vmatpush2.bf16.msra.mxu0 0
    %1055 = vmatprep.subr.bf16.mxu0 0
    %1056 = vmatpush2.bf16.msra.mxu0 0
    %1057 = vmatprep.subr.bf16.mxu0 0
    %1058 = vmatpush2.bf16.msra.mxu0 0
    %1059 = vmatprep.subr.bf16.mxu0 0
    %1060 = vmatpush2.bf16.msra.mxu0 0
    %1061 = vmatprep.subr.bf16.mxu0 0
    %1062 = vmatpush2.bf16.msra.mxu0 0
    %1063 = vmatprep.subr.bf16.mxu0 0
    %1064 = vmatpush2.bf16.msra.mxu0 0
    %1065 = vmatprep.subr.bf16.mxu0 0
    %1066 = vmatpush2.bf16.msra.mxu0 0
    %1067 = vmatprep.mubr.bf16.mxu0 0
    %1068 = vmatmul.mubr.bf16.gmra.mxu0 %v1017
    %v1069 = vpop.f32.mrf.mxu0
    %v1070 = vadd.f32 0.0, %v1069
    %v1071 = vpop.f32.mrf.mxu0
    %v1072 = vadd.f32 0.0, %v1071
    %v1073 = vpop.f32.mrf.mxu0
    %v1074 = vadd.f32 0.0, %v1073
    %v1075 = vpop.f32.mrf.mxu0
    %v1076 = vadd.f32 0.0, %v1075
    %1077 = vdwg.mxu0
    %1078 = vmatprep.subr.bf16.mxu0 0
    %1079 = vmatpush1.bf16.msra.mxu0 %v719
    %1080 = vmatprep.subr.bf16.mxu0 0
    %1081 = vmatpush1.bf16.msra.mxu0 %v716
    %1082 = vmatprep.subr.bf16.mxu0 0
    %1083 = vmatpush1.bf16.msra.mxu0 %v713
    %1084 = vmatprep.subr.bf16.mxu0 0
    %1085 = vmatpush1.bf16.msra.mxu0 %v710
    %1086 = vmatprep.subr.bf16.mxu0 0
    %1087 = vmatpush1.bf16.msra.mxu0 %v707
    %1088 = vmatprep.subr.bf16.mxu0 0
    %1089 = vmatpush1.bf16.msra.mxu0 %v704
    %1090 = vmatprep.subr.bf16.mxu0 0
    %1091 = vmatpush1.bf16.msra.mxu0 %v701
    %1092 = vmatprep.subr.bf16.mxu0 0
    %1093 = vmatpush1.bf16.msra.mxu0 %v698
    %1094 = vmatprep.subr.bf16.mxu0 0
    %1095 = vmatpush2.bf16.msra.mxu0 0
    %1096 = vmatprep.subr.bf16.mxu0 0
    %1097 = vmatpush2.bf16.msra.mxu0 0
    %1098 = vmatprep.subr.bf16.mxu0 0
    %1099 = vmatpush2.bf16.msra.mxu0 0
    %1100 = vmatprep.subr.bf16.mxu0 0
    %1101 = vmatpush2.bf16.msra.mxu0 0
    %1102 = vmatprep.subr.bf16.mxu0 0
    %1103 = vmatpush2.bf16.msra.mxu0 0
    %1104 = vmatprep.subr.bf16.mxu0 0
    %1105 = vmatpush2.bf16.msra.mxu0 0
    %1106 = vmatprep.subr.bf16.mxu0 0
    %1107 = vmatpush2.bf16.msra.mxu0 0
    %1108 = vmatprep.subr.bf16.mxu0 0
    %1109 = vmatpush2.bf16.msra.mxu0 0
    %1110 = vmatprep.mubr.bf16.mxu0 0
    %1111 = vmatmul.mubr.bf16.gmra.mxu0 %v1017
    %v1112 = vpop.f32.mrf.mxu0
    %v1113 = vadd.f32 0.0, %v1112
    %v1114 = vpop.f32.mrf.mxu0
    %v1115 = vpop.f32.mrf.mxu0
    %v1116 = vadd.f32 0.0, %v1115
    %v1117 = vpop.f32.mrf.mxu0
    %1118 = vdwg.mxu0
    %v1119 = vadd.f32 %v1029, %v1070
    %v1120 = vadd.f32 %v1032, %v1074
    %v1121 = vxor.u32 %v1119, 2147483648
    %v1122 = vxor.u32 %v1120, 2147483648
    %v1123 = vmul.f32 %v1121, 1.442695
    %v1124 = vpow.pop %v1123
    %v1125 = vmul.f32 %v1122, 1.442695
    %v1126 = vpow.pop %v1125
    %v1127 = vadd.f32 %v1124, 1.0
    %v1128 = vadd.f32 %v1126, 1.0
    %v1129 = vrcp.pop %v1127
    %v1130 = vmul.f32 1.0, %v1129
    %v1131 = vrcp.pop %v1128
    %v1132 = vmul.f32 1.0, %v1131
    %v1133 = vadd.f32 %v1030, %v1072
    %v1134 = vadd.f32 %v1033, %v1076
    %v1135 = vxor.u32 %v1133, 2147483648
    %v1136 = vxor.u32 %v1134, 2147483648
    %v1137 = vmul.f32 %v1135, 1.442695
    %v1138 = vpow.pop %v1137
    %v1139 = vmul.f32 %v1136, 1.442695
    %v1140 = vpow.pop %v1139
    %v1141 = vadd.f32 %v1138, 1.0
    %v1142 = vadd.f32 %v1140, 1.0
    %v1143 = vrcp.pop %v1141
    %v1144 = vmul.f32 1.0, %v1143
    %v1145 = vrcp.pop %v1142
    %v1146 = vmul.f32 1.0, %v1145
    %v1147 = vadd.f32 %v1113, %v605
    %v1148 = vadd.f32 %v1116, %v605
    %v1149 = vmul.f32 %v1130, %v1147
    %v1150 = vmul.f32 %v1132, %v1148
    %v1151 = vadd.f32 %v1031, %v1149
    %v1152 = vadd.f32 %v1034, %v1150
    %v1153 = vtanh.pop %v1151
    %v1154 = vtanh.pop %v1152
    %v1155 = vsub.f32 1.0, %v1144
    %v1156 = vsub.f32 1.0, %v1146
    %v1157 = vmul.f32 %v1155, %v1153
    %v1158 = vmul.f32 %v1156, %v1154
    %v1159 = vmul.f32 %v1144, %v1015
    %v1160 = vmul.f32 %v1146, %v1016
    %v1161 = vadd.f32 %v1157, %v1159
    %v1162 = vadd.f32 %v1158, %v1160
    %v1163 = vpack.c.bf16 %v1162, %v1161
    %v1165 = vunpack.c.l.b16 %v1163
    %v1166 = vunpack.c.h.b16 %v1163
    %v1167 = vpack.c.b16 %v1165, %v1165
    %v1168 = vpack.c.b16 %v1166, %v1166
    %s1171 = scalar_lea.vmem [#allocation10], 16
    %1172 = vst [vmem:[%s1171] sm:$0xf] %v1167
    %1173 = vst [vmem:[%s1171 + $0x4] sm:$0xf] %v1168
    %s1174 = scalar_lea.vmem [#allocation3], 144
    %v1175 = vld [vmem:[%s1174] sm:$0xff]
    %v1176 = vld [vmem:[%s1174 + $0x8] sm:$0xff]
    %v1177 = vld [vmem:[%s1174 + $0x10] sm:$0xff]
    %v1178 = vld [vmem:[%s1174 + $0x18] sm:$0xff]
    %v1179 = vld [vmem:[%s1174 + $0x20] sm:$0xff]
    %v1180 = vld [vmem:[%s1174 + $0x28] sm:$0xff]
    %1181 = vmatprep.subr.bf16.mxu0 %v718
    %1182 = vmatpush1.bf16.msra.mxu0 %v717
    %1183 = vmatprep.subr.bf16.mxu0 %v715
    %1184 = vmatpush1.bf16.msra.mxu0 %v714
    %1185 = vmatprep.subr.bf16.mxu0 %v712
    %1186 = vmatpush1.bf16.msra.mxu0 %v711
    %1187 = vmatprep.subr.bf16.mxu0 %v709
    %1188 = vmatpush1.bf16.msra.mxu0 %v708
    %1189 = vmatprep.subr.bf16.mxu0 %v706
    %1190 = vmatpush1.bf16.msra.mxu0 %v705
    %1191 = vmatprep.subr.bf16.mxu0 %v703
    %1192 = vmatpush1.bf16.msra.mxu0 %v702
    %1193 = vmatprep.subr.bf16.mxu0 %v700
    %1194 = vmatpush1.bf16.msra.mxu0 %v699
    %1195 = vmatprep.subr.bf16.mxu0 %v697
    %1196 = vmatpush1.bf16.msra.mxu0 %v696
    %1197 = vmatprep.subr.bf16.mxu0 0
    %1198 = vmatpush2.bf16.msra.mxu0 0
    %1199 = vmatprep.subr.bf16.mxu0 0
    %1200 = vmatpush2.bf16.msra.mxu0 0
    %1201 = vmatprep.subr.bf16.mxu0 0
    %1202 = vmatpush2.bf16.msra.mxu0 0
    %1203 = vmatprep.subr.bf16.mxu0 0
    %1204 = vmatpush2.bf16.msra.mxu0 0
    %1205 = vmatprep.subr.bf16.mxu0 0
    %1206 = vmatpush2.bf16.msra.mxu0 0
    %1207 = vmatprep.subr.bf16.mxu0 0
    %1208 = vmatpush2.bf16.msra.mxu0 0
    %1209 = vmatprep.subr.bf16.mxu0 0
    %1210 = vmatpush2.bf16.msra.mxu0 0
    %1211 = vmatprep.subr.bf16.mxu0 0
    %1212 = vmatpush2.bf16.msra.mxu0 0
    %1213 = vmatprep.mubr.bf16.mxu0 0
    %1214 = vmatmul.mubr.bf16.gmra.mxu0 %v1163
    %v1215 = vpop.f32.mrf.mxu0
    %v1216 = vadd.f32 0.0, %v1215
    %v1217 = vpop.f32.mrf.mxu0
    %v1218 = vadd.f32 0.0, %v1217
    %v1219 = vpop.f32.mrf.mxu0
    %v1220 = vadd.f32 0.0, %v1219
    %v1221 = vpop.f32.mrf.mxu0
    %v1222 = vadd.f32 0.0, %v1221
    %1223 = vdwg.mxu0
    %1224 = vmatprep.subr.bf16.mxu0 0
    %1225 = vmatpush1.bf16.msra.mxu0 %v719
    %1226 = vmatprep.subr.bf16.mxu0 0
    %1227 = vmatpush1.bf16.msra.mxu0 %v716
    %1228 = vmatprep.subr.bf16.mxu0 0
    %1229 = vmatpush1.bf16.msra.mxu0 %v713
    %1230 = vmatprep.subr.bf16.mxu0 0
    %1231 = vmatpush1.bf16.msra.mxu0 %v710
    %1232 = vmatprep.subr.bf16.mxu0 0
    %1233 = vmatpush1.bf16.msra.mxu0 %v707
    %1234 = vmatprep.subr.bf16.mxu0 0
    %1235 = vmatpush1.bf16.msra.mxu0 %v704
    %1236 = vmatprep.subr.bf16.mxu0 0
    %1237 = vmatpush1.bf16.msra.mxu0 %v701
    %1238 = vmatprep.subr.bf16.mxu0 0
    %1239 = vmatpush1.bf16.msra.mxu0 %v698
    %1240 = vmatprep.subr.bf16.mxu0 0
    %1241 = vmatpush2.bf16.msra.mxu0 0
    %1242 = vmatprep.subr.bf16.mxu0 0
    %1243 = vmatpush2.bf16.msra.mxu0 0
    %1244 = vmatprep.subr.bf16.mxu0 0
    %1245 = vmatpush2.bf16.msra.mxu0 0
    %1246 = vmatprep.subr.bf16.mxu0 0
    %1247 = vmatpush2.bf16.msra.mxu0 0
    %1248 = vmatprep.subr.bf16.mxu0 0
    %1249 = vmatpush2.bf16.msra.mxu0 0
    %1250 = vmatprep.subr.bf16.mxu0 0
    %1251 = vmatpush2.bf16.msra.mxu0 0
    %1252 = vmatprep.subr.bf16.mxu0 0
    %1253 = vmatpush2.bf16.msra.mxu0 0
    %1254 = vmatprep.subr.bf16.mxu0 0
    %1255 = vmatpush2.bf16.msra.mxu0 0
    %1256 = vmatprep.mubr.bf16.mxu0 0
    %1257 = vmatmul.mubr.bf16.gmra.mxu0 %v1163
    %v1258 = vpop.f32.mrf.mxu0
    %v1259 = vadd.f32 0.0, %v1258
    %v1260 = vpop.f32.mrf.mxu0
    %v1261 = vpop.f32.mrf.mxu0
    %v1262 = vadd.f32 0.0, %v1261
    %v1263 = vpop.f32.mrf.mxu0
    %1264 = vdwg.mxu0
    %v1265 = vadd.f32 %v1175, %v1216
    %v1266 = vadd.f32 %v1178, %v1220
    %v1267 = vxor.u32 %v1265, 2147483648
    %v1268 = vxor.u32 %v1266, 2147483648
    %v1269 = vmul.f32 %v1267, 1.442695
    %v1270 = vpow.pop %v1269
    %v1271 = vmul.f32 %v1268, 1.442695
    %v1272 = vpow.pop %v1271
    %v1273 = vadd.f32 %v1270, 1.0
    %v1274 = vadd.f32 %v1272, 1.0
    %v1275 = vrcp.pop %v1273
    %v1276 = vmul.f32 1.0, %v1275
    %v1277 = vrcp.pop %v1274
    %v1278 = vmul.f32 1.0, %v1277
    %v1279 = vadd.f32 %v1176, %v1218
    %v1280 = vadd.f32 %v1179, %v1222
    %v1281 = vxor.u32 %v1279, 2147483648
    %v1282 = vxor.u32 %v1280, 2147483648
    %v1283 = vmul.f32 %v1281, 1.442695
    %v1284 = vpow.pop %v1283
    %v1285 = vmul.f32 %v1282, 1.442695
    %v1286 = vpow.pop %v1285
    %v1287 = vadd.f32 %v1284, 1.0
    %v1288 = vadd.f32 %v1286, 1.0
    %v1289 = vrcp.pop %v1287
    %v1290 = vmul.f32 1.0, %v1289
    %v1291 = vrcp.pop %v1288
    %v1292 = vmul.f32 1.0, %v1291
    %v1293 = vadd.f32 %v1259, %v605
    %v1294 = vadd.f32 %v1262, %v605
    %v1295 = vmul.f32 %v1276, %v1293
    %v1296 = vmul.f32 %v1278, %v1294
    %v1297 = vadd.f32 %v1177, %v1295
    %v1298 = vadd.f32 %v1180, %v1296
    %v1299 = vtanh.pop %v1297
    %v1300 = vtanh.pop %v1298
    %v1301 = vsub.f32 1.0, %v1290
    %v1302 = vsub.f32 1.0, %v1292
    %v1303 = vmul.f32 %v1301, %v1299
    %v1304 = vmul.f32 %v1302, %v1300
    %v1305 = vmul.f32 %v1290, %v1161
    %v1306 = vmul.f32 %v1292, %v1162
    %v1307 = vadd.f32 %v1303, %v1305
    %v1308 = vadd.f32 %v1304, %v1306
    %v1309 = vpack.c.bf16 %v1308, %v1307
    %v1311 = vunpack.c.l.b16 %v1309
    %v1312 = vunpack.c.h.b16 %v1309
    %v1313 = vpack.c.b16 %v1311, %v1311
    %v1314 = vpack.c.b16 %v1312, %v1312
    %s1317 = scalar_lea.vmem [#allocation10], 24
    %1318 = vst [vmem:[%s1317] sm:$0xf] %v1313
    %1319 = vst [vmem:[%s1317 + $0x4] sm:$0xf] %v1314
    %s1320 = scalar_lea.vmem [#allocation3], 192
    %v1321 = vld [vmem:[%s1320] sm:$0xff]
    %v1322 = vld [vmem:[%s1320 + $0x8] sm:$0xff]
    %v1323 = vld [vmem:[%s1320 + $0x10] sm:$0xff]
    %v1324 = vld [vmem:[%s1320 + $0x18] sm:$0xff]
    %v1325 = vld [vmem:[%s1320 + $0x20] sm:$0xff]
    %v1326 = vld [vmem:[%s1320 + $0x28] sm:$0xff]
    %1327 = vmatprep.subr.bf16.mxu0 %v718
    %1328 = vmatpush1.bf16.msra.mxu0 %v717
    %1329 = vmatprep.subr.bf16.mxu0 %v715
    %1330 = vmatpush1.bf16.msra.mxu0 %v714
    %1331 = vmatprep.subr.bf16.mxu0 %v712
    %1332 = vmatpush1.bf16.msra.mxu0 %v711
    %1333 = vmatprep.subr.bf16.mxu0 %v709
    %1334 = vmatpush1.bf16.msra.mxu0 %v708
    %1335 = vmatprep.subr.bf16.mxu0 %v706
    %1336 = vmatpush1.bf16.msra.mxu0 %v705
    %1337 = vmatprep.subr.bf16.mxu0 %v703
    %1338 = vmatpush1.bf16.msra.mxu0 %v702
    %1339 = vmatprep.subr.bf16.mxu0 %v700
    %1340 = vmatpush1.bf16.msra.mxu0 %v699
    %1341 = vmatprep.subr.bf16.mxu0 %v697
    %1342 = vmatpush1.bf16.msra.mxu0 %v696
    %1343 = vmatprep.subr.bf16.mxu0 0
    %1344 = vmatpush2.bf16.msra.mxu0 0
    %1345 = vmatprep.subr.bf16.mxu0 0
    %1346 = vmatpush2.bf16.msra.mxu0 0
    %1347 = vmatprep.subr.bf16.mxu0 0
    %1348 = vmatpush2.bf16.msra.mxu0 0
    %1349 = vmatprep.subr.bf16.mxu0 0
    %1350 = vmatpush2.bf16.msra.mxu0 0
    %1351 = vmatprep.subr.bf16.mxu0 0
    %1352 = vmatpush2.bf16.msra.mxu0 0
    %1353 = vmatprep.subr.bf16.mxu0 0
    %1354 = vmatpush2.bf16.msra.mxu0 0
    %1355 = vmatprep.subr.bf16.mxu0 0
    %1356 = vmatpush2.bf16.msra.mxu0 0
    %1357 = vmatprep.subr.bf16.mxu0 0
    %1358 = vmatpush2.bf16.msra.mxu0 0
    %1359 = vmatprep.mubr.bf16.mxu0 0
    %1360 = vmatmul.mubr.bf16.gmra.mxu0 %v1309
    %v1361 = vpop.f32.mrf.mxu0
    %v1362 = vadd.f32 0.0, %v1361
    %v1363 = vpop.f32.mrf.mxu0
    %v1364 = vadd.f32 0.0, %v1363
    %v1365 = vpop.f32.mrf.mxu0
    %v1366 = vadd.f32 0.0, %v1365
    %v1367 = vpop.f32.mrf.mxu0
    %v1368 = vadd.f32 0.0, %v1367
    %1369 = vdwg.mxu0
    %1370 = vmatprep.subr.bf16.mxu0 0
    %1371 = vmatpush1.bf16.msra.mxu0 %v719
    %1372 = vmatprep.subr.bf16.mxu0 0
    %1373 = vmatpush1.bf16.msra.mxu0 %v716
    %1374 = vmatprep.subr.bf16.mxu0 0
    %1375 = vmatpush1.bf16.msra.mxu0 %v713
    %1376 = vmatprep.subr.bf16.mxu0 0
    %1377 = vmatpush1.bf16.msra.mxu0 %v710
    %1378 = vmatprep.subr.bf16.mxu0 0
    %1379 = vmatpush1.bf16.msra.mxu0 %v707
    %1380 = vmatprep.subr.bf16.mxu0 0
    %1381 = vmatpush1.bf16.msra.mxu0 %v704
    %1382 = vmatprep.subr.bf16.mxu0 0
    %1383 = vmatpush1.bf16.msra.mxu0 %v701
    %1384 = vmatprep.subr.bf16.mxu0 0
    %1385 = vmatpush1.bf16.msra.mxu0 %v698
    %1386 = vmatprep.subr.bf16.mxu0 0
    %1387 = vmatpush2.bf16.msra.mxu0 0
    %1388 = vmatprep.subr.bf16.mxu0 0
    %1389 = vmatpush2.bf16.msra.mxu0 0
    %1390 = vmatprep.subr.bf16.mxu0 0
    %1391 = vmatpush2.bf16.msra.mxu0 0
    %1392 = vmatprep.subr.bf16.mxu0 0
    %1393 = vmatpush2.bf16.msra.mxu0 0
    %1394 = vmatprep.subr.bf16.mxu0 0
    %1395 = vmatpush2.bf16.msra.mxu0 0
    %1396 = vmatprep.subr.bf16.mxu0 0
    %1397 = vmatpush2.bf16.msra.mxu0 0
    %1398 = vmatprep.subr.bf16.mxu0 0
    %1399 = vmatpush2.bf16.msra.mxu0 0
    %1400 = vmatprep.subr.bf16.mxu0 0
    %1401 = vmatpush2.bf16.msra.mxu0 0
    %1402 = vmatprep.mubr.bf16.mxu0 0
    %1403 = vmatmul.mubr.bf16.gmra.mxu0 %v1309
    %v1404 = vpop.f32.mrf.mxu0
    %v1405 = vadd.f32 0.0, %v1404
    %v1406 = vpop.f32.mrf.mxu0
    %v1407 = vpop.f32.mrf.mxu0
    %v1408 = vadd.f32 0.0, %v1407
    %v1409 = vpop.f32.mrf.mxu0
    %1410 = vdwg.mxu0
    %v1411 = vadd.f32 %v1321, %v1362
    %v1412 = vadd.f32 %v1324, %v1366
    %v1413 = vxor.u32 %v1411, 2147483648
    %v1414 = vxor.u32 %v1412, 2147483648
    %v1415 = vmul.f32 %v1413, 1.442695
    %v1416 = vpow.pop %v1415
    %v1417 = vmul.f32 %v1414, 1.442695
    %v1418 = vpow.pop %v1417
    %v1419 = vadd.f32 %v1416, 1.0
    %v1420 = vadd.f32 %v1418, 1.0
    %v1421 = vrcp.pop %v1419
    %v1422 = vmul.f32 1.0, %v1421
    %v1423 = vrcp.pop %v1420
    %v1424 = vmul.f32 1.0, %v1423
    %v1425 = vadd.f32 %v1322, %v1364
    %v1426 = vadd.f32 %v1325, %v1368
    %v1427 = vxor.u32 %v1425, 2147483648
    %v1428 = vxor.u32 %v1426, 2147483648
    %v1429 = vmul.f32 %v1427, 1.442695
    %v1430 = vpow.pop %v1429
    %v1431 = vmul.f32 %v1428, 1.442695
    %v1432 = vpow.pop %v1431
    %v1433 = vadd.f32 %v1430, 1.0
    %v1434 = vadd.f32 %v1432, 1.0
    %v1435 = vrcp.pop %v1433
    %v1436 = vmul.f32 1.0, %v1435
    %v1437 = vrcp.pop %v1434
    %v1438 = vmul.f32 1.0, %v1437
    %v1439 = vadd.f32 %v1405, %v605
    %v1440 = vadd.f32 %v1408, %v605
    %v1441 = vmul.f32 %v1422, %v1439
    %v1442 = vmul.f32 %v1424, %v1440
    %v1443 = vadd.f32 %v1323, %v1441
    %v1444 = vadd.f32 %v1326, %v1442
    %v1445 = vtanh.pop %v1443
    %v1446 = vtanh.pop %v1444
    %v1447 = vsub.f32 1.0, %v1436
    %v1448 = vsub.f32 1.0, %v1438
    %v1449 = vmul.f32 %v1447, %v1445
    %v1450 = vmul.f32 %v1448, %v1446
    %v1451 = vmul.f32 %v1436, %v1307
    %v1452 = vmul.f32 %v1438, %v1308
    %v1453 = vadd.f32 %v1449, %v1451
    %v1454 = vadd.f32 %v1450, %v1452
    %v1455 = vpack.c.bf16 %v1454, %v1453
    %v1457 = vunpack.c.l.b16 %v1455
    %v1458 = vunpack.c.h.b16 %v1455
    %v1459 = vpack.c.b16 %v1457, %v1457
    %v1460 = vpack.c.b16 %v1458, %v1458
    %s1463 = scalar_lea.vmem [#allocation10], 32
    %1464 = vst [vmem:[%s1463] sm:$0xf] %v1459
    %1465 = vst [vmem:[%s1463 + $0x4] sm:$0xf] %v1460
    %s1466 = scalar_lea.vmem [#allocation3], 240
    %v1467 = vld [vmem:[%s1466] sm:$0xff]
    %v1468 = vld [vmem:[%s1466 + $0x8] sm:$0xff]
    %v1469 = vld [vmem:[%s1466 + $0x10] sm:$0xff]
    %v1470 = vld [vmem:[%s1466 + $0x18] sm:$0xff]
    %v1471 = vld [vmem:[%s1466 + $0x20] sm:$0xff]
    %v1472 = vld [vmem:[%s1466 + $0x28] sm:$0xff]
    %1473 = vmatprep.subr.bf16.mxu0 %v718
    %1474 = vmatpush1.bf16.msra.mxu0 %v717
    %1475 = vmatprep.subr.bf16.mxu0 %v715
    %1476 = vmatpush1.bf16.msra.mxu0 %v714
    %1477 = vmatprep.subr.bf16.mxu0 %v712
    %1478 = vmatpush1.bf16.msra.mxu0 %v711
    %1479 = vmatprep.subr.bf16.mxu0 %v709
    %1480 = vmatpush1.bf16.msra.mxu0 %v708
    %1481 = vmatprep.subr.bf16.mxu0 %v706
    %1482 = vmatpush1.bf16.msra.mxu0 %v705
    %1483 = vmatprep.subr.bf16.mxu0 %v703
    %1484 = vmatpush1.bf16.msra.mxu0 %v702
    %1485 = vmatprep.subr.bf16.mxu0 %v700
    %1486 = vmatpush1.bf16.msra.mxu0 %v699
    %1487 = vmatprep.subr.bf16.mxu0 %v697
    %1488 = vmatpush1.bf16.msra.mxu0 %v696
    %1489 = vmatprep.subr.bf16.mxu0 0
    %1490 = vmatpush2.bf16.msra.mxu0 0
    %1491 = vmatprep.subr.bf16.mxu0 0
    %1492 = vmatpush2.bf16.msra.mxu0 0
    %1493 = vmatprep.subr.bf16.mxu0 0
    %1494 = vmatpush2.bf16.msra.mxu0 0
    %1495 = vmatprep.subr.bf16.mxu0 0
    %1496 = vmatpush2.bf16.msra.mxu0 0
    %1497 = vmatprep.subr.bf16.mxu0 0
    %1498 = vmatpush2.bf16.msra.mxu0 0
    %1499 = vmatprep.subr.bf16.mxu0 0
    %1500 = vmatpush2.bf16.msra.mxu0 0
    %1501 = vmatprep.subr.bf16.mxu0 0
    %1502 = vmatpush2.bf16.msra.mxu0 0
    %1503 = vmatprep.subr.bf16.mxu0 0
    %1504 = vmatpush2.bf16.msra.mxu0 0
    %1505 = vmatprep.mubr.bf16.mxu0 0
    %1506 = vmatmul.mubr.bf16.gmra.mxu0 %v1455
    %v1507 = vpop.f32.mrf.mxu0
    %v1508 = vadd.f32 0.0, %v1507
    %v1509 = vpop.f32.mrf.mxu0
    %v1510 = vadd.f32 0.0, %v1509
    %v1511 = vpop.f32.mrf.mxu0
    %v1512 = vadd.f32 0.0, %v1511
    %v1513 = vpop.f32.mrf.mxu0
    %v1514 = vadd.f32 0.0, %v1513
    %1515 = vdwg.mxu0
    %1516 = vmatprep.subr.bf16.mxu0 0
    %1517 = vmatpush1.bf16.msra.mxu0 %v719
    %1518 = vmatprep.subr.bf16.mxu0 0
    %1519 = vmatpush1.bf16.msra.mxu0 %v716
    %1520 = vmatprep.subr.bf16.mxu0 0
    %1521 = vmatpush1.bf16.msra.mxu0 %v713
    %1522 = vmatprep.subr.bf16.mxu0 0
    %1523 = vmatpush1.bf16.msra.mxu0 %v710
    %1524 = vmatprep.subr.bf16.mxu0 0
    %1525 = vmatpush1.bf16.msra.mxu0 %v707
    %1526 = vmatprep.subr.bf16.mxu0 0
    %1527 = vmatpush1.bf16.msra.mxu0 %v704
    %1528 = vmatprep.subr.bf16.mxu0 0
    %1529 = vmatpush1.bf16.msra.mxu0 %v701
    %1530 = vmatprep.subr.bf16.mxu0 0
    %1531 = vmatpush1.bf16.msra.mxu0 %v698
    %1532 = vmatprep.subr.bf16.mxu0 0
    %1533 = vmatpush2.bf16.msra.mxu0 0
    %1534 = vmatprep.subr.bf16.mxu0 0
    %1535 = vmatpush2.bf16.msra.mxu0 0
    %1536 = vmatprep.subr.bf16.mxu0 0
    %1537 = vmatpush2.bf16.msra.mxu0 0
    %1538 = vmatprep.subr.bf16.mxu0 0
    %1539 = vmatpush2.bf16.msra.mxu0 0
    %1540 = vmatprep.subr.bf16.mxu0 0
    %1541 = vmatpush2.bf16.msra.mxu0 0
    %1542 = vmatprep.subr.bf16.mxu0 0
    %1543 = vmatpush2.bf16.msra.mxu0 0
    %1544 = vmatprep.subr.bf16.mxu0 0
    %1545 = vmatpush2.bf16.msra.mxu0 0
    %1546 = vmatprep.subr.bf16.mxu0 0
    %1547 = vmatpush2.bf16.msra.mxu0 0
    %1548 = vmatprep.mubr.bf16.mxu0 0
    %1549 = vmatmul.mubr.bf16.gmra.mxu0 %v1455
    %v1550 = vpop.f32.mrf.mxu0
    %v1551 = vadd.f32 0.0, %v1550
    %v1552 = vpop.f32.mrf.mxu0
    %v1553 = vpop.f32.mrf.mxu0
    %v1554 = vadd.f32 0.0, %v1553
    %v1555 = vpop.f32.mrf.mxu0
    %1556 = vdwg.mxu0
    %v1557 = vadd.f32 %v1467, %v1508
    %v1558 = vadd.f32 %v1470, %v1512
    %v1559 = vxor.u32 %v1557, 2147483648
    %v1560 = vxor.u32 %v1558, 2147483648
    %v1561 = vmul.f32 %v1559, 1.442695
    %v1562 = vpow.pop %v1561
    %v1563 = vmul.f32 %v1560, 1.442695
    %v1564 = vpow.pop %v1563
    %v1565 = vadd.f32 %v1562, 1.0
    %v1566 = vadd.f32 %v1564, 1.0
    %v1567 = vrcp.pop %v1565
    %v1568 = vmul.f32 1.0, %v1567
    %v1569 = vrcp.pop %v1566
    %v1570 = vmul.f32 1.0, %v1569
    %v1571 = vadd.f32 %v1468, %v1510
    %v1572 = vadd.f32 %v1471, %v1514
    %v1573 = vxor.u32 %v1571, 2147483648
    %v1574 = vxor.u32 %v1572, 2147483648
    %v1575 = vmul.f32 %v1573, 1.442695
    %v1576 = vpow.pop %v1575
    %v1577 = vmul.f32 %v1574, 1.442695
    %v1578 = vpow.pop %v1577
    %v1579 = vadd.f32 %v1576, 1.0
    %v1580 = vadd.f32 %v1578, 1.0
    %v1581 = vrcp.pop %v1579
    %v1582 = vmul.f32 1.0, %v1581
    %v1583 = vrcp.pop %v1580
    %v1584 = vmul.f32 1.0, %v1583
    %v1585 = vadd.f32 %v1551, %v605
    %v1586 = vadd.f32 %v1554, %v605
    %v1587 = vmul.f32 %v1568, %v1585
    %v1588 = vmul.f32 %v1570, %v1586
    %v1589 = vadd.f32 %v1469, %v1587
    %v1590 = vadd.f32 %v1472, %v1588
    %v1591 = vtanh.pop %v1589
    %v1592 = vtanh.pop %v1590
    %v1593 = vsub.f32 1.0, %v1582
    %v1594 = vsub.f32 1.0, %v1584
    %v1595 = vmul.f32 %v1593, %v1591
    %v1596 = vmul.f32 %v1594, %v1592
    %v1597 = vmul.f32 %v1582, %v1453
    %v1598 = vmul.f32 %v1584, %v1454
    %v1599 = vadd.f32 %v1595, %v1597
    %v1600 = vadd.f32 %v1596, %v1598
    %v1601 = vpack.c.bf16 %v1600, %v1599
    %v1603 = vunpack.c.l.b16 %v1601
    %v1604 = vunpack.c.h.b16 %v1601
    %v1605 = vpack.c.b16 %v1603, %v1603
    %v1606 = vpack.c.b16 %v1604, %v1604
    %s1609 = scalar_lea.vmem [#allocation10], 40
    %1610 = vst [vmem:[%s1609] sm:$0xf] %v1605
    %1611 = vst [vmem:[%s1609 + $0x4] sm:$0xf] %v1606
    %s1612 = scalar_lea.vmem [#allocation3], 288
    %v1613 = vld [vmem:[%s1612] sm:$0xff]
    %v1614 = vld [vmem:[%s1612 + $0x8] sm:$0xff]
    %v1615 = vld [vmem:[%s1612 + $0x10] sm:$0xff]
    %v1616 = vld [vmem:[%s1612 + $0x18] sm:$0xff]
    %v1617 = vld [vmem:[%s1612 + $0x20] sm:$0xff]
    %v1618 = vld [vmem:[%s1612 + $0x28] sm:$0xff]
    %1619 = vmatprep.subr.bf16.mxu0 %v718
    %1620 = vmatpush1.bf16.msra.mxu0 %v717
    %1621 = vmatprep.subr.bf16.mxu0 %v715
    %1622 = vmatpush1.bf16.msra.mxu0 %v714
    %1623 = vmatprep.subr.bf16.mxu0 %v712
    %1624 = vmatpush1.bf16.msra.mxu0 %v711
    %1625 = vmatprep.subr.bf16.mxu0 %v709
    %1626 = vmatpush1.bf16.msra.mxu0 %v708
    %1627 = vmatprep.subr.bf16.mxu0 %v706
    %1628 = vmatpush1.bf16.msra.mxu0 %v705
    %1629 = vmatprep.subr.bf16.mxu0 %v703
    %1630 = vmatpush1.bf16.msra.mxu0 %v702
    %1631 = vmatprep.subr.bf16.mxu0 %v700
    %1632 = vmatpush1.bf16.msra.mxu0 %v699
    %1633 = vmatprep.subr.bf16.mxu0 %v697
    %1634 = vmatpush1.bf16.msra.mxu0 %v696
    %1635 = vmatprep.subr.bf16.mxu0 0
    %1636 = vmatpush2.bf16.msra.mxu0 0
    %1637 = vmatprep.subr.bf16.mxu0 0
    %1638 = vmatpush2.bf16.msra.mxu0 0
    %1639 = vmatprep.subr.bf16.mxu0 0
    %1640 = vmatpush2.bf16.msra.mxu0 0
    %1641 = vmatprep.subr.bf16.mxu0 0
    %1642 = vmatpush2.bf16.msra.mxu0 0
    %1643 = vmatprep.subr.bf16.mxu0 0
    %1644 = vmatpush2.bf16.msra.mxu0 0
    %1645 = vmatprep.subr.bf16.mxu0 0
    %1646 = vmatpush2.bf16.msra.mxu0 0
    %1647 = vmatprep.subr.bf16.mxu0 0
    %1648 = vmatpush2.bf16.msra.mxu0 0
    %1649 = vmatprep.subr.bf16.mxu0 0
    %1650 = vmatpush2.bf16.msra.mxu0 0
    %1651 = vmatprep.mubr.bf16.mxu0 0
    %1652 = vmatmul.mubr.bf16.gmra.mxu0 %v1601
    %v1653 = vpop.f32.mrf.mxu0
    %v1654 = vadd.f32 0.0, %v1653
    %v1655 = vpop.f32.mrf.mxu0
    %v1656 = vadd.f32 0.0, %v1655
    %v1657 = vpop.f32.mrf.mxu0
    %v1658 = vadd.f32 0.0, %v1657
    %v1659 = vpop.f32.mrf.mxu0
    %v1660 = vadd.f32 0.0, %v1659
    %1661 = vdwg.mxu0
    %1662 = vmatprep.subr.bf16.mxu0 0
    %1663 = vmatpush1.bf16.msra.mxu0 %v719
    %1664 = vmatprep.subr.bf16.mxu0 0
    %1665 = vmatpush1.bf16.msra.mxu0 %v716
    %1666 = vmatprep.subr.bf16.mxu0 0
    %1667 = vmatpush1.bf16.msra.mxu0 %v713
    %1668 = vmatprep.subr.bf16.mxu0 0
    %1669 = vmatpush1.bf16.msra.mxu0 %v710
    %1670 = vmatprep.subr.bf16.mxu0 0
    %1671 = vmatpush1.bf16.msra.mxu0 %v707
    %1672 = vmatprep.subr.bf16.mxu0 0
    %1673 = vmatpush1.bf16.msra.mxu0 %v704
    %1674 = vmatprep.subr.bf16.mxu0 0
    %1675 = vmatpush1.bf16.msra.mxu0 %v701
    %1676 = vmatprep.subr.bf16.mxu0 0
    %1677 = vmatpush1.bf16.msra.mxu0 %v698
    %1678 = vmatprep.subr.bf16.mxu0 0
    %1679 = vmatpush2.bf16.msra.mxu0 0
    %1680 = vmatprep.subr.bf16.mxu0 0
    %1681 = vmatpush2.bf16.msra.mxu0 0
    %1682 = vmatprep.subr.bf16.mxu0 0
    %1683 = vmatpush2.bf16.msra.mxu0 0
    %1684 = vmatprep.subr.bf16.mxu0 0
    %1685 = vmatpush2.bf16.msra.mxu0 0
    %1686 = vmatprep.subr.bf16.mxu0 0
    %1687 = vmatpush2.bf16.msra.mxu0 0
    %1688 = vmatprep.subr.bf16.mxu0 0
    %1689 = vmatpush2.bf16.msra.mxu0 0
    %1690 = vmatprep.subr.bf16.mxu0 0
    %1691 = vmatpush2.bf16.msra.mxu0 0
    %1692 = vmatprep.subr.bf16.mxu0 0
    %1693 = vmatpush2.bf16.msra.mxu0 0
    %1694 = vmatprep.mubr.bf16.mxu0 0
    %1695 = vmatmul.mubr.bf16.gmra.mxu0 %v1601
    %v1696 = vpop.f32.mrf.mxu0
    %v1697 = vadd.f32 0.0, %v1696
    %v1698 = vpop.f32.mrf.mxu0
    %v1699 = vpop.f32.mrf.mxu0
    %v1700 = vadd.f32 0.0, %v1699
    %v1701 = vpop.f32.mrf.mxu0
    %1702 = vdwg.mxu0
    %v1703 = vadd.f32 %v1613, %v1654
    %v1704 = vadd.f32 %v1616, %v1658
    %v1705 = vxor.u32 %v1703, 2147483648
    %v1706 = vxor.u32 %v1704, 2147483648
    %v1707 = vmul.f32 %v1705, 1.442695
    %v1708 = vpow.pop %v1707
    %v1709 = vmul.f32 %v1706, 1.442695
    %v1710 = vpow.pop %v1709
    %v1711 = vadd.f32 %v1708, 1.0
    %v1712 = vadd.f32 %v1710, 1.0
    %v1713 = vrcp.pop %v1711
    %v1714 = vmul.f32 1.0, %v1713
    %v1715 = vrcp.pop %v1712
    %v1716 = vmul.f32 1.0, %v1715
    %v1717 = vadd.f32 %v1614, %v1656
    %v1718 = vadd.f32 %v1617, %v1660
    %v1719 = vxor.u32 %v1717, 2147483648
    %v1720 = vxor.u32 %v1718, 2147483648
    %v1721 = vmul.f32 %v1719, 1.442695
    %v1722 = vpow.pop %v1721
    %v1723 = vmul.f32 %v1720, 1.442695
    %v1724 = vpow.pop %v1723
    %v1725 = vadd.f32 %v1722, 1.0
    %v1726 = vadd.f32 %v1724, 1.0
    %v1727 = vrcp.pop %v1725
    %v1728 = vmul.f32 1.0, %v1727
    %v1729 = vrcp.pop %v1726
    %v1730 = vmul.f32 1.0, %v1729
    %v1731 = vadd.f32 %v1697, %v605
    %v1732 = vadd.f32 %v1700, %v605
    %v1733 = vmul.f32 %v1714, %v1731
    %v1734 = vmul.f32 %v1716, %v1732
    %v1735 = vadd.f32 %v1615, %v1733
    %v1736 = vadd.f32 %v1618, %v1734
    %v1737 = vtanh.pop %v1735
    %v1738 = vtanh.pop %v1736
    %v1739 = vsub.f32 1.0, %v1728
    %v1740 = vsub.f32 1.0, %v1730
    %v1741 = vmul.f32 %v1739, %v1737
    %v1742 = vmul.f32 %v1740, %v1738
    %v1743 = vmul.f32 %v1728, %v1599
    %v1744 = vmul.f32 %v1730, %v1600
    %v1745 = vadd.f32 %v1741, %v1743
    %v1746 = vadd.f32 %v1742, %v1744
    %v1747 = vpack.c.bf16 %v1746, %v1745
    %v1749 = vunpack.c.l.b16 %v1747
    %v1750 = vunpack.c.h.b16 %v1747
    %v1751 = vpack.c.b16 %v1749, %v1749
    %v1752 = vpack.c.b16 %v1750, %v1750
    %s1755 = scalar_lea.vmem [#allocation10], 48
    %1756 = vst [vmem:[%s1755] sm:$0xf] %v1751
    %1757 = vst [vmem:[%s1755 + $0x4] sm:$0xf] %v1752
    %s1758 = scalar_lea.vmem [#allocation3], 336
    %v1759 = vld [vmem:[%s1758] sm:$0xff]
    %v1760 = vld [vmem:[%s1758 + $0x8] sm:$0xff]
    %v1761 = vld [vmem:[%s1758 + $0x10] sm:$0xff]
    %v1762 = vld [vmem:[%s1758 + $0x18] sm:$0xff]
    %v1763 = vld [vmem:[%s1758 + $0x20] sm:$0xff]
    %v1764 = vld [vmem:[%s1758 + $0x28] sm:$0xff]
    %1765 = vmatprep.subr.bf16.mxu0 %v718
    %1766 = vmatpush1.bf16.msra.mxu0 %v717
    %1767 = vmatprep.subr.bf16.mxu0 %v715
    %1768 = vmatpush1.bf16.msra.mxu0 %v714
    %1769 = vmatprep.subr.bf16.mxu0 %v712
    %1770 = vmatpush1.bf16.msra.mxu0 %v711
    %1771 = vmatprep.subr.bf16.mxu0 %v709
    %1772 = vmatpush1.bf16.msra.mxu0 %v708
    %1773 = vmatprep.subr.bf16.mxu0 %v706
    %1774 = vmatpush1.bf16.msra.mxu0 %v705
    %1775 = vmatprep.subr.bf16.mxu0 %v703
    %1776 = vmatpush1.bf16.msra.mxu0 %v702
    %1777 = vmatprep.subr.bf16.mxu0 %v700
    %1778 = vmatpush1.bf16.msra.mxu0 %v699
    %1779 = vmatprep.subr.bf16.mxu0 %v697
    %1780 = vmatpush1.bf16.msra.mxu0 %v696
    %1781 = vmatprep.subr.bf16.mxu0 0
    %1782 = vmatpush2.bf16.msra.mxu0 0
    %1783 = vmatprep.subr.bf16.mxu0 0
    %1784 = vmatpush2.bf16.msra.mxu0 0
    %1785 = vmatprep.subr.bf16.mxu0 0
    %1786 = vmatpush2.bf16.msra.mxu0 0
    %1787 = vmatprep.subr.bf16.mxu0 0
    %1788 = vmatpush2.bf16.msra.mxu0 0
    %1789 = vmatprep.subr.bf16.mxu0 0
    %1790 = vmatpush2.bf16.msra.mxu0 0
    %1791 = vmatprep.subr.bf16.mxu0 0
    %1792 = vmatpush2.bf16.msra.mxu0 0
    %1793 = vmatprep.subr.bf16.mxu0 0
    %1794 = vmatpush2.bf16.msra.mxu0 0
    %1795 = vmatprep.subr.bf16.mxu0 0
    %1796 = vmatpush2.bf16.msra.mxu0 0
    %1797 = vmatprep.mubr.bf16.mxu0 0
    %1798 = vmatmul.mubr.bf16.gmra.mxu0 %v1747
    %v1799 = vpop.f32.mrf.mxu0
    %v1800 = vadd.f32 0.0, %v1799
    %v1801 = vpop.f32.mrf.mxu0
    %v1802 = vadd.f32 0.0, %v1801
    %v1803 = vpop.f32.mrf.mxu0
    %v1804 = vadd.f32 0.0, %v1803
    %v1805 = vpop.f32.mrf.mxu0
    %v1806 = vadd.f32 0.0, %v1805
    %1807 = vdwg.mxu0
    %1808 = vmatprep.subr.bf16.mxu0 0
    %1809 = vmatpush1.bf16.msra.mxu0 %v719
    %1810 = vmatprep.subr.bf16.mxu0 0
    %1811 = vmatpush1.bf16.msra.mxu0 %v716
    %1812 = vmatprep.subr.bf16.mxu0 0
    %1813 = vmatpush1.bf16.msra.mxu0 %v713
    %1814 = vmatprep.subr.bf16.mxu0 0
    %1815 = vmatpush1.bf16.msra.mxu0 %v710
    %1816 = vmatprep.subr.bf16.mxu0 0
    %1817 = vmatpush1.bf16.msra.mxu0 %v707
    %1818 = vmatprep.subr.bf16.mxu0 0
    %1819 = vmatpush1.bf16.msra.mxu0 %v704
    %1820 = vmatprep.subr.bf16.mxu0 0
    %1821 = vmatpush1.bf16.msra.mxu0 %v701
    %1822 = vmatprep.subr.bf16.mxu0 0
    %1823 = vmatpush1.bf16.msra.mxu0 %v698
    %1824 = vmatprep.subr.bf16.mxu0 0
    %1825 = vmatpush2.bf16.msra.mxu0 0
    %1826 = vmatprep.subr.bf16.mxu0 0
    %1827 = vmatpush2.bf16.msra.mxu0 0
    %1828 = vmatprep.subr.bf16.mxu0 0
    %1829 = vmatpush2.bf16.msra.mxu0 0
    %1830 = vmatprep.subr.bf16.mxu0 0
    %1831 = vmatpush2.bf16.msra.mxu0 0
    %1832 = vmatprep.subr.bf16.mxu0 0
    %1833 = vmatpush2.bf16.msra.mxu0 0
    %1834 = vmatprep.subr.bf16.mxu0 0
    %1835 = vmatpush2.bf16.msra.mxu0 0
    %1836 = vmatprep.subr.bf16.mxu0 0
    %1837 = vmatpush2.bf16.msra.mxu0 0
    %1838 = vmatprep.subr.bf16.mxu0 0
    %1839 = vmatpush2.bf16.msra.mxu0 0
    %1840 = vmatprep.mubr.bf16.mxu0 0
    %1841 = vmatmul.mubr.bf16.gmra.mxu0 %v1747
    %v1842 = vpop.f32.mrf.mxu0
    %v1843 = vadd.f32 0.0, %v1842
    %v1844 = vpop.f32.mrf.mxu0
    %v1845 = vpop.f32.mrf.mxu0
    %v1846 = vadd.f32 0.0, %v1845
    %v1847 = vpop.f32.mrf.mxu0
    %1848 = vdwg.mxu0
    %v1849 = vadd.f32 %v1759, %v1800
    %v1850 = vadd.f32 %v1762, %v1804
    %v1851 = vxor.u32 %v1849, 2147483648
    %v1852 = vxor.u32 %v1850, 2147483648
    %v1853 = vmul.f32 %v1851, 1.442695
    %v1854 = vpow.pop %v1853
    %v1855 = vmul.f32 %v1852, 1.442695
    %v1856 = vpow.pop %v1855
    %v1857 = vadd.f32 %v1854, 1.0
    %v1858 = vadd.f32 %v1856, 1.0
    %v1859 = vrcp.pop %v1857
    %v1860 = vmul.f32 1.0, %v1859
    %v1861 = vrcp.pop %v1858
    %v1862 = vmul.f32 1.0, %v1861
    %v1863 = vadd.f32 %v1760, %v1802
    %v1864 = vadd.f32 %v1763, %v1806
    %v1865 = vxor.u32 %v1863, 2147483648
    %v1866 = vxor.u32 %v1864, 2147483648
    %v1867 = vmul.f32 %v1865, 1.442695
    %v1868 = vpow.pop %v1867
    %v1869 = vmul.f32 %v1866, 1.442695
    %v1870 = vpow.pop %v1869
    %v1871 = vadd.f32 %v1868, 1.0
    %v1872 = vadd.f32 %v1870, 1.0
    %v1873 = vrcp.pop %v1871
    %v1874 = vmul.f32 1.0, %v1873
    %v1875 = vrcp.pop %v1872
    %v1876 = vmul.f32 1.0, %v1875
    %v1877 = vadd.f32 %v1843, %v605
    %v1878 = vadd.f32 %v1846, %v605
    %v1879 = vmul.f32 %v1860, %v1877
    %v1880 = vmul.f32 %v1862, %v1878
    %v1881 = vadd.f32 %v1761, %v1879
    %v1882 = vadd.f32 %v1764, %v1880
    %v1883 = vtanh.pop %v1881
    %v1884 = vtanh.pop %v1882
    %v1885 = vsub.f32 1.0, %v1874
    %v1886 = vsub.f32 1.0, %v1876
    %v1887 = vmul.f32 %v1885, %v1883
    %v1888 = vmul.f32 %v1886, %v1884
    %v1889 = vmul.f32 %v1874, %v1745
    %v1890 = vmul.f32 %v1876, %v1746
    %v1891 = vadd.f32 %v1887, %v1889
    %v1892 = vadd.f32 %v1888, %v1890
    %v1893 = vpack.c.bf16 %v1892, %v1891
    %v1895 = vunpack.c.l.b16 %v1893
    %v1896 = vunpack.c.h.b16 %v1893
    %v1897 = vpack.c.b16 %v1895, %v1895
    %v1898 = vpack.c.b16 %v1896, %v1896
    %s1901 = scalar_lea.vmem [#allocation10], 56
    %1902 = vst [vmem:[%s1901] sm:$0xf] %v1897
    %1903 = vst [vmem:[%s1901 + $0x4] sm:$0xf] %v1898
    %1904 = vst [vmem:[#allocation2] sm:$0xff] %v1891
    %1905 = vst [vmem:[#allocation2 + $0x8] sm:$0xff] %v1892
    // Predicated region
    $region38: #{tpu_custom_call.1} parent=1 // pred_check
      _
    $region39: #{tpu_custom_call.1} parent=1 // pred_check_branch
      %1907 = sbr.rel (0) target = $region41
    $region40: #{tpu_custom_call.1} parent=1 // pred_region
      %s1909 = ssub.s32 1024, 1024
      %1910 = vsyncadd [#allocation6], %s1909
      %s1911 = sshll.u32 [#allocation10], 4
      %s1912 = int_to_ptr.vmem [resolvable:$true] %s1911
      %1917 = dma.vmem_to_hbm [thread:$0]  %s1912, 1024, %s5, [#allocation6], 64, 64, 4
    $region41: #{tpu_custom_call.1} parent=1 // pred_fallthru
      _
    // Predicated region
    $region42: #{tpu_custom_call.1} parent=1 // pred_check
      _
    $region43: #{tpu_custom_call.1} parent=1 // pred_check_branch
      %1919 = sbr.rel (0) target = $region45
    $region44: #{tpu_custom_call.1} parent=1 // pred_region
      %1920 = dma.done [#allocation6], 1024
    $region45: #{tpu_custom_call.1} parent=1 // pred_fallthru
      _
    %1921 = vsyncpa [#allocation5], 1
    %1922 = vsyncpa [#allocation8], 1
    %1923 = vsyncpa [#allocation6], 1

</llo_original>
